<compile_context>
chip_gen: v6e
topology: v6e:2x2x1
jax: 0.10.0
libtpu: 0.0.40
codegen_flags: <defaults>
</compile_context>

<pallas_src>
import functools

import jax
import jax.numpy as jnp
from jax.experimental import pallas as pl
from jax.experimental.pallas import tpu as pltpu

MARGIN = 3.0
ALPHA = 0.1  # unused: first-call center update term is analytically zero.


def _onecenter_kernel(x_ref, bona_ref, bw_ref, aw_ref,
                      loss_ref, center_ref, cnt_ref, *, inv_b):
    """Fused two-phase kernel.

    phase 0 (program_id(0) == 0): center_ref <- sum(x[bona]), cnt_ref <- #bona
    phase 1 (program_id(0) == 1): center_ref <- center, loss_ref <- mean loss
    """
    phase = pl.program_id(0)
    tile = pl.program_id(1)
    n_tiles = pl.num_programs(1)

    x = x_ref[...].astype(jnp.float32)                      # (TB, D)

    @pl.when(phase == 0)
    def _phase0():
        @pl.when(tile == 0)
        def _():
            center_ref[...] = jnp.zeros_like(center_ref)
            cnt_ref[...] = jnp.zeros_like(cnt_ref)

        bona = bona_ref[...]                                # (1, TB) mask
        # Masked feature sum as an MXU matvec: (1, TB) @ (TB, D) -> (1, D).
        center_ref[...] += jnp.dot(
            bona, x,
            preferred_element_type=jnp.float32,
            precision=jax.lax.Precision.HIGHEST)
        cnt_ref[...] += jnp.sum(bona, axis=1, keepdims=True)  # (1, 1)

    @pl.when(phase == 1)
    def _phase1():
        @pl.when(tile == 0)
        def _():
            # Finalize center = masked-sum / max(count, 1) (guard: no bonafide
            # rows -> zero center instead of NaN) and reset the loss
            # accumulator.
            inv_n = 1.0 / jnp.maximum(cnt_ref[...], 1.0)
            center_ref[...] = center_ref[...] * inv_n
            loss_ref[...] = jnp.zeros_like(loss_ref)

        c = center_ref[...]                                 # (1, D)
        bw = bw_ref[...]                                    # (TB, 1): 1-labels
        aw = aw_ref[...]                                    # (TB, 1): labels

        # ||x - c||^2 = ||x||^2 - 2 x.c + ||c||^2
        x_sq = jnp.sum(x * x, axis=1, keepdims=True)        # (TB, 1) VPU+XLU
        xc = jax.lax.dot_general(
            x, c, (((1,), (1,)), ((), ())),
            preferred_element_type=jnp.float32,
            precision=jax.lax.Precision.HIGHEST)            # (TB, 1) MXU
        c_sq = jnp.sum(c * c, axis=1, keepdims=True)        # (1, 1)

        dist2 = jnp.maximum(x_sq - 2.0 * xc + c_sq, 0.0)
        dist = jnp.sqrt(dist2)

        per_row = (bw * (0.5 * dist2)
                   + aw * jnp.square(jnp.maximum(MARGIN - dist, 0.0)))
        loss_ref[...] += jnp.sum(per_row, keepdims=True)    # (1, 1)

        @pl.when(tile == n_tiles - 1)
        def _():
            loss_ref[...] *= jnp.float32(inv_b)             # mean over real B


def onecenter_loss(x, labels, *, block_b=2048):
    """x: (B, D) float32 / bfloat16, labels: (B,) in {0, 1}.

    Returns (loss scalar, center (1, D) float32). On the first call the
    updated center equals the bonafide mean (alpha-update term is zero)."""
    B, D = x.shape
    labels_f = jnp.reshape(labels, (B,)).astype(jnp.float32)

    bona = (labels_f == 0.0).astype(jnp.float32)            # center mask
    bw = 1.0 - labels_f                                     # bonafide weight
    aw = labels_f                                           # attack weight

    # Batch tiling: cap the tile so the double-buffered (TB, D) f32 block stays
    # well inside VMEM even on v7x (2 * 2048 * 512 * 4B = 8 MiB for x).
    tb = B if B <= block_b else block_b
    num_tiles = pl.cdiv(B, tb)
    b_pad = num_tiles * tb
    if b_pad != B:
        x = jnp.pad(x, ((0, b_pad - B), (0, 0)))
        bona = jnp.pad(bona, (0, b_pad - B))                # pad rows: weight 0
        bw = jnp.pad(bw, (0, b_pad - B))
        aw = jnp.pad(aw, (0, b_pad - B))

    bona_row = bona.reshape(1, b_pad)
    bw_col = bw.reshape(b_pad, 1)
    aw_col = aw.reshape(b_pad, 1)

    def serp(p, i):
        # phase 0 walks tiles 0..N-1, phase 1 walks N-1..0 (serpentine), so the
        # block index is unchanged across the phase boundary and Pallas skips
        # the redundant DMA for that tile.
        return i + p * (num_tiles - 1 - 2 * i)

    kernel = functools.partial(_onecenter_kernel, inv_b=1.0 / B)

    loss, center = pl.pallas_call(
        kernel,
        out_shape=(jax.ShapeDtypeStruct((1, 1), jnp.float32),
                   jax.ShapeDtypeStruct((1, D), jnp.float32)),
        grid_spec=pltpu.PrefetchScalarGridSpec(
            num_scalar_prefetch=0,
            grid=(2, num_tiles),
            in_specs=[
                pl.BlockSpec((tb, D), lambda p, i: (serp(p, i), 0)),
                pl.BlockSpec((1, tb), lambda p, i: (0, serp(p, i))),
                pl.BlockSpec((tb, 1), lambda p, i: (serp(p, i), 0)),
                pl.BlockSpec((tb, 1), lambda p, i: (serp(p, i), 0)),
            ],
            out_specs=(
                pl.BlockSpec((1, 1), lambda p, i: (0, 0)),
                pl.BlockSpec((1, D), lambda p, i: (0, 0)),
            ),
            scratch_shapes=[pltpu.VMEM((1, 1), jnp.float32)],   # bona count
        ),
        compiler_params=pltpu.CompilerParams(
            dimension_semantics=("arbitrary", "arbitrary")),
    )(x, bona_row, bw_col, aw_col)

    return loss[0, 0], center


def _reference(x, labels):
    labels = labels.astype(jnp.float32)
    x = x.astype(jnp.float32)
    ones = labels == 0.0
    center = (jnp.sum(jnp.where(ones[:, None], x, 0.0), axis=0, keepdims=True)
              / jnp.sum(ones))
    diff = x - center
    dist = jnp.sqrt(jnp.sum(diff * diff, axis=1))
    bona = (1.0 - labels) * dist ** 2 / 2.0
    att = labels * jnp.maximum(MARGIN - dist, 0.0) ** 2
    loss = jnp.mean(bona + att)
    # First-call alpha-update term mean((x - center)[labels==0]) is zero.
    return loss, center


if __name__ == "__main__":
    key = jax.random.PRNGKey(0)
    B, D = 8, 512  # module default feature dim is 512
    kx, kl = jax.random.split(key)

    # Case 1: small batch, single tile.
    x = jax.random.normal(kx, (B, D), dtype=jnp.float32)
    labels = jnp.array([0, 1, 0, 1, 0, 1, 0, 1], dtype=jnp.float32)

    loss, new_center = onecenter_loss(x, labels)
    loss = jax.block_until_ready(loss)
    new_center = jax.block_until_ready(new_center)

    ref_loss, ref_center = _reference(x, labels)
    assert jnp.allclose(loss, ref_loss, rtol=1e-4, atol=1e-4), (loss, ref_loss)
    assert jnp.allclose(new_center, ref_center, rtol=1e-4, atol=1e-4), "center mismatch"

    # Case 2: exercise the multi-tile / padded path (forced small tile).
    B2 = 300
    k2x, k2l = jax.random.split(kl)
    x2 = jax.random.normal(k2x, (B2, D), dtype=jnp.float32)
    labels2 = jax.random.bernoulli(k2l, 0.5, (B2,)).astype(jnp.float32)
    loss2, center2 = onecenter_loss(x2, labels2, block_b=128)
    loss2 = jax.block_until_ready(loss2)
    ref_loss2, ref_center2 = _reference(x2, labels2)
    assert jnp.allclose(loss2, ref_loss2, rtol=1e-4, atol=1e-4), (loss2, ref_loss2)
    assert jnp.allclose(center2, ref_center2, rtol=1e-4, atol=1e-4), "center mismatch (tiled)"

    print("KERNEL_OK")
</pallas_src>

<mosaic_0001>
module attributes {stable_mosaic.version = 11 : i64} {
  func.func @_onecenter_kernel(%arg0: i32, %arg1: i32, %arg2: memref<8x512xf32, #tpu.memory_space<vmem>>, %arg3: memref<1x8xf32, #tpu.memory_space<vmem>>, %arg4: memref<8x1xf32, #tpu.memory_space<vmem>>, %arg5: memref<8x1xf32, #tpu.memory_space<vmem>>, %arg6: memref<1x1xf32, #tpu.memory_space<vmem>>, %arg7: memref<1x512xf32, #tpu.memory_space<vmem>>, %arg8: memref<1x1xf32, #tpu.memory_space<vmem>>) attributes {dimension_semantics = [#tpu.dimension_semantics<arbitrary>, #tpu.dimension_semantics<arbitrary>], iteration_bounds = array<i64: 2, 1>, scalar_prefetch = 0 : i64, scratch_operands = 1 : i64, tpu.core_type = #tpu.core_type<tc>, window_params = [{transform_indices = @transform_0, window_bounds = array<i64: 8, 512>}, {transform_indices = @transform_1, window_bounds = array<i64: 1, 8>}, {transform_indices = @transform_2, window_bounds = array<i64: 8, 1>}, {transform_indices = @transform_3, window_bounds = array<i64: 8, 1>}, {pipeline_mode = #tpu.pipeline_mode<synchronous>, transform_indices = @transform_4, window_bounds = array<i64: 1, 1>}, {pipeline_mode = #tpu.pipeline_mode<synchronous>, transform_indices = @transform_5, window_bounds = array<i64: 1, 512>}]} {
    %c0 = arith.constant 0 : index
    %c0_0 = arith.constant 0 : index
    %0 = vector.load %arg2[%c0, %c0_0] : memref<8x512xf32, #tpu.memory_space<vmem>>, vector<8x512xf32>
    %c0_i32 = arith.constant 0 : i32
    %1 = arith.cmpi eq, %arg0, %c0_i32 : i32
    %2 = arith.extui %1 : i1 to i32
    %c0_i32_1 = arith.constant 0 : i32
    %3 = arith.cmpi ne, %2, %c0_i32_1 : i32
    scf.if %3 {
      %c0_i32_3 = arith.constant 0 : i32
      %7 = arith.cmpi eq, %arg1, %c0_i32_3 : i32
      %8 = arith.extui %7 : i1 to i32
      %c0_i32_4 = arith.constant 0 : i32
      %9 = arith.cmpi ne, %8, %c0_i32_4 : i32
      scf.if %9 {
        %cst_16 = arith.constant 0.000000e+00 : f32
        %20 = vector.broadcast %cst_16 : f32 to vector<1x512xf32>
        %c0_17 = arith.constant 0 : index
        %c0_18 = arith.constant 0 : index
        %21 = vector.load %arg7[%c0_17, %c0_18] : memref<1x512xf32, #tpu.memory_space<vmem>>, vector<1x512xf32>
        tpu.vector_store %arg7[%c0_17, %c0_18], %20 {strides = array<i32>} : memref<1x512xf32, #tpu.memory_space<vmem>>, vector<1x512xf32>,
        %cst_19 = arith.constant 0.000000e+00 : f32
        %22 = vector.broadcast %cst_19 : f32 to vector<1x1xf32>
        %c0_20 = arith.constant 0 : index
        %c0_21 = arith.constant 0 : index
        %23 = vector.load %arg8[%c0_20, %c0_21] : memref<1x1xf32, #tpu.memory_space<vmem>>, vector<1x1xf32>
        tpu.vector_store %arg8[%c0_20, %c0_21], %22 {strides = array<i32>} : memref<1x1xf32, #tpu.memory_space<vmem>>, vector<1x1xf32>,
      } else {
      }
      %c0_5 = arith.constant 0 : index
      %c0_6 = arith.constant 0 : index
      %10 = vector.load %arg3[%c0_5, %c0_6] : memref<1x8xf32, #tpu.memory_space<vmem>>, vector<1x8xf32>
      %c0_7 = arith.constant 0 : index
      %c0_8 = arith.constant 0 : index
      %11 = vector.load %arg7[%c0_7, %c0_8] : memref<1x512xf32, #tpu.memory_space<vmem>>, vector<1x512xf32>
      %cst = arith.constant dense<0.000000e+00> : vector<1x512xf32>
      %12 = tpu.matmul %10, %0, %cst {dimension_numbers = #tpu.dot_dimension_numbers<[1], [0], [0], [1], [0, 0, 1, 1], [], []>, precision = #tpu.contract_precision<fp32>} : vector<1x8xf32>, vector<8x512xf32>, vector<1x512xf32> -> vector<1x512xf32>
      %13 = arith.addf %11, %12 : vector<1x512xf32>
      %c0_9 = arith.constant 0 : index
      %c0_10 = arith.constant 0 : index
      %14 = vector.load %arg7[%c0_9, %c0_10] : memref<1x512xf32, #tpu.memory_space<vmem>>, vector<1x512xf32>
      tpu.vector_store %arg7[%c0_9, %c0_10], %13 {strides = array<i32>} : memref<1x512xf32, #tpu.memory_space<vmem>>, vector<1x512xf32>,
      %c0_11 = arith.constant 0 : index
      %c0_12 = arith.constant 0 : index
      %15 = vector.load %arg8[%c0_11, %c0_12] : memref<1x1xf32, #tpu.memory_space<vmem>>, vector<1x1xf32>
      %cst_13 = arith.constant dense<0.000000e+00> : vector<1xf32>
      %16 = vector.multi_reduction <add>, %10, %cst_13 [1] : vector<1x8xf32> to vector<1xf32>
      %17 = vector.shape_cast %16 : vector<1xf32> to vector<1x1xf32>
      %18 = arith.addf %15, %17 : vector<1x1xf32>
      %c0_14 = arith.constant 0 : index
      %c0_15 = arith.constant 0 : index
      %19 = vector.load %arg8[%c0_14, %c0_15] : memref<1x1xf32, #tpu.memory_space<vmem>>, vector<1x1xf32>
      tpu.vector_store %arg8[%c0_14, %c0_15], %18 {strides = array<i32>} : memref<1x1xf32, #tpu.memory_space<vmem>>, vector<1x1xf32>,
    } else {
    }
    %c1_i32 = arith.constant 1 : i32
    %4 = arith.cmpi eq, %arg0, %c1_i32 : i32
    %5 = arith.extui %4 : i1 to i32
    %c0_i32_2 = arith.constant 0 : i32
    %6 = arith.cmpi ne, %5, %c0_i32_2 : i32
    scf.if %6 {
      %c0_i32_3 = arith.constant 0 : i32
      %7 = arith.cmpi eq, %arg1, %c0_i32_3 : i32
      %8 = arith.extui %7 : i1 to i32
      %c0_i32_4 = arith.constant 0 : i32
      %9 = arith.cmpi ne, %8, %c0_i32_4 : i32
      scf.if %9 {
        %c0_25 = arith.constant 0 : index
        %c0_26 = arith.constant 0 : index
        %49 = vector.load %arg8[%c0_25, %c0_26] : memref<1x1xf32, #tpu.memory_space<vmem>>, vector<1x1xf32>
        %cst_27 = arith.constant 1.000000e+00 : f32
        %50 = vector.broadcast %cst_27 : f32 to vector<1x1xf32>
        %51 = arith.maximumf %49, %50 : vector<1x1xf32>
        %cst_28 = arith.constant 1.000000e+00 : f32
        %52 = vector.broadcast %cst_28 : f32 to vector<1x1xf32>
        %53 = arith.divf %52, %51 : vector<1x1xf32>
        %c0_29 = arith.constant 0 : index
        %c0_30 = arith.constant 0 : index
        %54 = vector.load %arg7[%c0_29, %c0_30] : memref<1x512xf32, #tpu.memory_space<vmem>>, vector<1x512xf32>
        %55 = vector.broadcast %53 : vector<1x1xf32> to vector<1x512xf32>
        %56 = arith.mulf %54, %55 : vector<1x512xf32>
        %c0_31 = arith.constant 0 : index
        %c0_32 = arith.constant 0 : index
        %57 = vector.load %arg7[%c0_31, %c0_32] : memref<1x512xf32, #tpu.memory_space<vmem>>, vector<1x512xf32>
        tpu.vector_store %arg7[%c0_31, %c0_32], %56 {strides = array<i32>} : memref<1x512xf32, #tpu.memory_space<vmem>>, vector<1x512xf32>,
        %cst_33 = arith.constant 0.000000e+00 : f32
        %58 = vector.broadcast %cst_33 : f32 to vector<1x1xf32>
        %c0_34 = arith.constant 0 : index
        %c0_35 = arith.constant 0 : index
        %59 = vector.load %arg6[%c0_34, %c0_35] : memref<1x1xf32, #tpu.memory_space<vmem>>, vector<1x1xf32>
        tpu.vector_store %arg6[%c0_34, %c0_35], %58 {strides = array<i32>} : memref<1x1xf32, #tpu.memory_space<vmem>>, vector<1x1xf32>,
      } else {
      }
      %c0_5 = arith.constant 0 : index
      %c0_6 = arith.constant 0 : index
      %10 = vector.load %arg7[%c0_5, %c0_6] : memref<1x512xf32, #tpu.memory_space<vmem>>, vector<1x512xf32>
      %c0_7 = arith.constant 0 : index
      %c0_8 = arith.constant 0 : index
      %11 = vector.load %arg4[%c0_7, %c0_8] : memref<8x1xf32, #tpu.memory_space<vmem>>, vector<8x1xf32>
      %c0_9 = arith.constant 0 : index
      %c0_10 = arith.constant 0 : index
      %12 = vector.load %arg5[%c0_9, %c0_10] : memref<8x1xf32, #tpu.memory_space<vmem>>, vector<8x1xf32>
      %13 = arith.mulf %0, %0 : vector<8x512xf32>
      %cst = arith.constant dense<0.000000e+00> : vector<8xf32>
      %14 = vector.multi_reduction <add>, %13, %cst [1] : vector<8x512xf32> to vector<8xf32>
      %15 = vector.shape_cast %14 : vector<8xf32> to vector<8x1xf32>
      %cst_11 = arith.constant dense<0.000000e+00> : vector<8x1xf32>
      %16 = tpu.matmul %0, %10, %cst_11 {dimension_numbers = #tpu.dot_dimension_numbers<[1], [1], [0], [0], [0, 0, 1, 0], [], []>, precision = #tpu.contract_precision<fp32>} : vector<8x512xf32>, vector<1x512xf32>, vector<8x1xf32> -> vector<8x1xf32>
      %17 = arith.mulf %10, %10 : vector<1x512xf32>
      %cst_12 = arith.constant dense<0.000000e+00> : vector<1xf32>
      %18 = vector.multi_reduction <add>, %17, %cst_12 [1] : vector<1x512xf32> to vector<1xf32>
      %19 = vector.shape_cast %18 : vector<1xf32> to vector<1x1xf32>
      %cst_13 = arith.constant 2.000000e+00 : f32
      %20 = vector.broadcast %cst_13 : f32 to vector<8x1xf32>
      %21 = arith.mulf %20, %16 : vector<8x1xf32>
      %22 = arith.subf %15, %21 : vector<8x1xf32>
      %23 = vector.broadcast %19 : vector<1x1xf32> to vector<8x1xf32>
      %24 = arith.addf %22, %23 : vector<8x1xf32>
      %cst_14 = arith.constant 0.000000e+00 : f32
      %25 = vector.broadcast %cst_14 : f32 to vector<8x1xf32>
      %26 = arith.maximumf %24, %25 : vector<8x1xf32>
      %27 = math.sqrt %26 : vector<8x1xf32>
      %cst_15 = arith.constant 5.000000e-01 : f32
      %28 = vector.broadcast %cst_15 : f32 to vector<8x1xf32>
      %29 = arith.mulf %28, %26 : vector<8x1xf32>
      %30 = arith.mulf %11, %29 : vector<8x1xf32>
      %cst_16 = arith.constant 3.000000e+00 : f32
      %31 = vector.broadcast %cst_16 : f32 to vector<8x1xf32>
      %32 = arith.subf %31, %27 : vector<8x1xf32>
      %cst_17 = arith.constant 0.000000e+00 : f32
      %33 = vector.broadcast %cst_17 : f32 to vector<8x1xf32>
      %34 = arith.maximumf %32, %33 : vector<8x1xf32>
      %35 = arith.mulf %34, %34 : vector<8x1xf32>
      %36 = arith.mulf %12, %35 : vector<8x1xf32>
      %37 = arith.addf %30, %36 : vector<8x1xf32>
      %c0_18 = arith.constant 0 : index
      %c0_19 = arith.constant 0 : index
      %38 = vector.load %arg6[%c0_18, %c0_19] : memref<1x1xf32, #tpu.memory_space<vmem>>, vector<1x1xf32>
      %39 = vector.shape_cast %37 : vector<8x1xf32> to vector<1x8x1xf32>
      %cst_20 = arith.constant dense<0.000000e+00> : vector<1xf32>
      %40 = vector.multi_reduction <add>, %39, %cst_20 [1, 2] : vector<1x8x1xf32> to vector<1xf32>
      %41 = vector.shape_cast %40 : vector<1xf32> to vector<1x1x1xf32>
      %42 = vector.extract %41[0, 0, 0] : f32 from vector<1x1x1xf32>
      %43 = vector.broadcast %42 : f32 to vector<1x1xf32>
      %44 = arith.addf %38, %43 : vector<1x1xf32>
      %c0_21 = arith.constant 0 : index
      %c0_22 = arith.constant 0 : index
      %45 = vector.load %arg6[%c0_21, %c0_22] : memref<1x1xf32, #tpu.memory_space<vmem>>, vector<1x1xf32>
      tpu.vector_store %arg6[%c0_21, %c0_22], %44 {strides = array<i32>} : memref<1x1xf32, #tpu.memory_space<vmem>>, vector<1x1xf32>,
      %c0_i32_23 = arith.constant 0 : i32
      %46 = arith.cmpi eq, %arg1, %c0_i32_23 : i32
      %47 = arith.extui %46 : i1 to i32
      %c0_i32_24 = arith.constant 0 : i32
      %48 = arith.cmpi ne, %47, %c0_i32_24 : i32
      scf.if %48 {
        %c0_25 = arith.constant 0 : index
        %c0_26 = arith.constant 0 : index
        %49 = vector.load %arg6[%c0_25, %c0_26] : memref<1x1xf32, #tpu.memory_space<vmem>>, vector<1x1xf32>
        %cst_27 = arith.constant 1.250000e-01 : f32
        %50 = vector.broadcast %cst_27 : f32 to vector<1x1xf32>
        %51 = arith.mulf %49, %50 : vector<1x1xf32>
        %c0_28 = arith.constant 0 : index
        %c0_29 = arith.constant 0 : index
        %52 = vector.load %arg6[%c0_28, %c0_29] : memref<1x1xf32, #tpu.memory_space<vmem>>, vector<1x1xf32>
        tpu.vector_store %arg6[%c0_28, %c0_29], %51 {strides = array<i32>} : memref<1x1xf32, #tpu.memory_space<vmem>>, vector<1x1xf32>,
      } else {
      }
    } else {
    }
    return
  }
  func.func @transform_0(%arg0: i32, %arg1: i32) -> (i32, i32) {
    %c2_i32 = arith.constant 2 : i32
    %0 = arith.muli %c2_i32, %arg1 : i32
    %c0_i32 = arith.constant 0 : i32
    %1 = arith.subi %c0_i32, %0 : i32
    %2 = arith.muli %arg0, %1 : i32
    %3 = arith.addi %arg1, %2 : i32
    %c0_i32_0 = arith.constant 0 : i32
    %c0_i32_1 = arith.constant 0 : i32
    return %3, %c0_i32_0 : i32, i32
  }
  func.func @transform_1(%arg0: i32, %arg1: i32) -> (i32, i32) {
    %c2_i32 = arith.constant 2 : i32
    %0 = arith.muli %c2_i32, %arg1 : i32
    %c0_i32 = arith.constant 0 : i32
    %1 = arith.subi %c0_i32, %0 : i32
    %2 = arith.muli %arg0, %1 : i32
    %3 = arith.addi %arg1, %2 : i32
    %c0_i32_0 = arith.constant 0 : i32
    %c0_i32_1 = arith.constant 0 : i32
    return %c0_i32_0, %3 : i32, i32
  }
  func.func @transform_2(%arg0: i32, %arg1: i32) -> (i32, i32) {
    %c2_i32 = arith.constant 2 : i32
    %0 = arith.muli %c2_i32, %arg1 : i32
    %c0_i32 = arith.constant 0 : i32
    %1 = arith.subi %c0_i32, %0 : i32
    %2 = arith.muli %arg0, %1 : i32
    %3 = arith.addi %arg1, %2 : i32
    %c0_i32_0 = arith.constant 0 : i32
    %c0_i32_1 = arith.constant 0 : i32
    return %3, %c0_i32_0 : i32, i32
  }
  func.func @transform_3(%arg0: i32, %arg1: i32) -> (i32, i32) {
    %c2_i32 = arith.constant 2 : i32
    %0 = arith.muli %c2_i32, %arg1 : i32
    %c0_i32 = arith.constant 0 : i32
    %1 = arith.subi %c0_i32, %0 : i32
    %2 = arith.muli %arg0, %1 : i32
    %3 = arith.addi %arg1, %2 : i32
    %c0_i32_0 = arith.constant 0 : i32
    %c0_i32_1 = arith.constant 0 : i32
    return %3, %c0_i32_0 : i32, i32
  }
  func.func @transform_4(%arg0: i32, %arg1: i32) -> (i32, i32) {
    %c0_i32 = arith.constant 0 : i32
    %c0_i32_0 = arith.constant 0 : i32
    %c0_i32_1 = arith.constant 0 : i32
    return %c0_i32, %c0_i32_0 : i32, i32
  }
  func.func @transform_5(%arg0: i32, %arg1: i32) -> (i32, i32) {
    %c0_i32 = arith.constant 0 : i32
    %c0_i32_0 = arith.constant 0 : i32
    %c0_i32_1 = arith.constant 0 : i32
    return %c0_i32, %c0_i32_0 : i32, i32
  }
}

</mosaic_0001>

<llo_original>
// kernel: tpu_custom_call.1
$region0: #{tpu_custom_call.1}
  #allocation0 [shape = 'u32[]', space=smem, size = 0x4, offset = 0x4, fixed_abs, tag = 'smem constant byte address 0x4 - core index']
  #allocation1 [shape = 'u32[144,128]{1,0:T(1,128)}', space=vmem, size = 0x12000, scoped, tag = 'internal scratch']
  #allocation2 [shape = 'f32[1,1]{1,0:T(1,128)}', space=vmem, size = 0x200, scoped, tag = 'scratch operand']
  %s0 = inlined_call_operand.hbm [shape: f32[8,512], index: 0, kind: input, shape index: {}]
  %s1 = inlined_call_operand.vmem [shape: f32[1,8], index: 1, kind: input, shape index: {}]
  %s2 = inlined_call_operand.vmem [shape: f32[8,1], index: 2, kind: input, shape index: {}]
  %s3 = inlined_call_operand.vmem [shape: f32[8,1], index: 3, kind: input, shape index: {}]
  %s4 = inlined_call_operand.hbm [shape: f32[1,1], index: 4, kind: output, shape index: {0}]
  %s5 = inlined_call_operand.hbm [shape: f32[1,512], index: 5, kind: output, shape index: {1}]
  %6 = xla_tuple %s4, %s5
  %s7 = sld [smem:[#allocation0]]
  $region81: #{tpu_custom_call.1} parent=0
    _
  %s9 = ssub.s32 1, %s7
  %s10 = scalar_select 0, %s9, %s7
  $region1: #{tpu_custom_call.1} parent=0
    #allocation3 [shape = 'u8[32768]{0}', space=vmem, size = 0x8000, scoped, tag = 'input window, operand 0']
    #allocation4 [shape = 's32[2]{0}', space=sflag, size = 0x8, scoped, tag = 'scoped memory for tpu_custom_call.1']
    #allocation5 [shape = 's32[2]{0}', space=sflag, size = 0x8, scoped, tag = 'scoped memory for tpu_custom_call.1']
    #allocation6 [shape = 'u8[512]{0}', space=vmem, size = 0x400, scoped, tag = 'output window, operand 0, single buffered']
    #allocation7 [shape = 'u8[2048]{0}', space=vmem, size = 0x800, scoped, tag = 'output window, operand 1, single buffered']
    #allocation8 [shape = 's32[1]{0}', space=sflag, size = 0x4, scoped, tag = 'scoped memory for tpu_custom_call.1']
    %11 = vsyncpa [#allocation4], 0
    %s12 = scalar_lea.sflag [#allocation4], 1
    %13 = vsyncpa %s12, 0
    %14 = vsyncpa [#allocation5], 0
    %15 = vsyncpa [#allocation8], 0
    loop: start=0, step=1, limit=4
    $region2: #{tpu_custom_call.1} parent=1 // loop_pre_header
      _
    $region3: #{tpu_custom_call.1} parent=1 // loop_header
      %s17 = sphi 0, %s21
      %p18 = scmp.ge.s32.totalorder %s17, 4
      %s24 = sphi 0, %s36
      %s25 = sphi 0, %s32
      %s26 = sphi 0, %s24
      %s27 = sphi 0, %s25
      %s28 = sphi 0, %s26
      %s29 = sphi 0, %s27
      %s47 = sphi 0, %s49
      %s50 = sphi 0, %s47
      %s51 = sphi 0, %s50
      %s67 = sphi 0, %s51
      %s81 = sphi 0, %s83
      %s84 = sphi 0, %s81
      %s85 = sphi 0, %s84
      %s101 = sphi 0, %s85
      %s115 = sphi 0, %s117
      %s118 = sphi 0, %s115
      %s119 = sphi 0, %s118
      %s135 = sphi 0, %s119
      %s149 = sphi 0, %s151
      %s152 = sphi 0, %s149
      %s153 = sphi 0, %s152
      %s169 = sphi 0, %s153
      %s173 = sphi 0, %s173
      %s175 = sphi 0, %s173
      %s176 = sphi 0, %s175
      %s190 = sphi 0, %s176
      %s194 = sphi 0, %s194
      %s196 = sphi 0, %s194
      %s197 = sphi 0, %s196
      %s211 = sphi 0, %s197
    $region4: #{tpu_custom_call.1} parent=1 // loop_header_branch
      %20 = sbr.rel (%p18) target = $region8
    $region5: #{tpu_custom_call.1} parent=1 // loop_body
      %s22 = ssub.s32 %s17, 1
      %s23 = ssub.s32 %s17, 2
      %s30 = sadd.s32 1, %s25
      %p31 = scmp.ge.s32.totalorder %s30, 1
      %s32 = scalar_select %p31, 0, %s30
      %s33 = sadd.s32 1, %s24
      %s34 = scalar_select %p31, %s33, %s24
      %p35 = scmp.ge.s32.totalorder %s34, 2
      %s36 = scalar_select %p35, 0, %s34
      %s37 = smul.u32 %s25, 2
      %s38 = ssub.s32 0, %s37
      %s39 = smul.u32 %s24, %s38
      %s40 = sadd.s32 %s25, %s39
      %s41 = smul.u32 %s32, 2
      %s42 = ssub.s32 0, %s41
      %s43 = smul.u32 %s36, %s42
      %s44 = sadd.s32 %s32, %s43
      %s45 = ssub.s32 %s40, %s44
      %p46 = scmp.eq.s32.totalorder %s45, 0
      %s48 = sadd.s32 %s47, 1
      %s49 = scalar_select %p46, %s47, %s48
      %p52 = pneg %p46
      %p53 = scmp.eq.s32.totalorder %s17, 1
      %p54 = por %p52, %p53
      %p55 = scmp.ne.s32.totalorder %s47, %s50
      %p56 = scmp.eq.s32.totalorder %s17, 0
      %p57 = por %p55, %p56
      %p58 = scmp.ne.s32.totalorder %s47, %s50
      %p59 = scmp.eq.s32.totalorder %s22, 1
      %p60 = por %p58, %p59
      %p61 = scmp.ne.s32.totalorder %s50, %s51
      %p62 = scmp.eq.s32.totalorder %s22, 0
      %p63 = por %p61, %p62
      %p64 = scmp.ne.s32.totalorder %s50, %s51
      %p65 = scmp.eq.s32.totalorder %s23, 1
      %p66 = por %p64, %p65
      %p68 = scmp.ne.s32.totalorder %s51, %s67
      %p69 = scmp.eq.s32.totalorder %s23, 0
      %p70 = por %p68, %p69
      %s71 = smul.u32 %s25, 2
      %s72 = ssub.s32 0, %s71
      %s73 = smul.u32 %s24, %s72
      %s74 = sadd.s32 %s25, %s73
      %s75 = smul.u32 %s32, 2
      %s76 = ssub.s32 0, %s75
      %s77 = smul.u32 %s36, %s76
      %s78 = sadd.s32 %s32, %s77
      %s79 = ssub.s32 %s74, %s78
      %p80 = scmp.eq.s32.totalorder %s79, 0
      %s82 = sadd.s32 %s81, 1
      %s83 = scalar_select %p80, %s81, %s82
      %p86 = pneg %p80
      %p87 = scmp.eq.s32.totalorder %s17, 1
      %p88 = por %p86, %p87
      %p89 = scmp.ne.s32.totalorder %s81, %s84
      %p90 = scmp.eq.s32.totalorder %s17, 0
      %p91 = por %p89, %p90
      %p92 = scmp.ne.s32.totalorder %s81, %s84
      %p93 = scmp.eq.s32.totalorder %s22, 1
      %p94 = por %p92, %p93
      %p95 = scmp.ne.s32.totalorder %s84, %s85
      %p96 = scmp.eq.s32.totalorder %s22, 0
      %p97 = por %p95, %p96
      %p98 = scmp.ne.s32.totalorder %s84, %s85
      %p99 = scmp.eq.s32.totalorder %s23, 1
      %p100 = por %p98, %p99
      %p102 = scmp.ne.s32.totalorder %s85, %s101
      %p103 = scmp.eq.s32.totalorder %s23, 0
      %p104 = por %p102, %p103
      %s105 = smul.u32 %s25, 2
      %s106 = ssub.s32 0, %s105
      %s107 = smul.u32 %s24, %s106
      %s108 = sadd.s32 %s25, %s107
      %s109 = smul.u32 %s32, 2
      %s110 = ssub.s32 0, %s109
      %s111 = smul.u32 %s36, %s110
      %s112 = sadd.s32 %s32, %s111
      %s113 = ssub.s32 %s108, %s112
      %p114 = scmp.eq.s32.totalorder %s113, 0
      %s116 = sadd.s32 %s115, 1
      %s117 = scalar_select %p114, %s115, %s116
      %p120 = pneg %p114
      %p121 = scmp.eq.s32.totalorder %s17, 1
      %p122 = por %p120, %p121
      %p123 = scmp.ne.s32.totalorder %s115, %s118
      %p124 = scmp.eq.s32.totalorder %s17, 0
      %p125 = por %p123, %p124
      %p126 = scmp.ne.s32.totalorder %s115, %s118
      %p127 = scmp.eq.s32.totalorder %s22, 1
      %p128 = por %p126, %p127
      %p129 = scmp.ne.s32.totalorder %s118, %s119
      %p130 = scmp.eq.s32.totalorder %s22, 0
      %p131 = por %p129, %p130
      %p132 = scmp.ne.s32.totalorder %s118, %s119
      %p133 = scmp.eq.s32.totalorder %s23, 1
      %p134 = por %p132, %p133
      %p136 = scmp.ne.s32.totalorder %s119, %s135
      %p137 = scmp.eq.s32.totalorder %s23, 0
      %p138 = por %p136, %p137
      %s139 = smul.u32 %s25, 2
      %s140 = ssub.s32 0, %s139
      %s141 = smul.u32 %s24, %s140
      %s142 = sadd.s32 %s25, %s141
      %s143 = smul.u32 %s32, 2
      %s144 = ssub.s32 0, %s143
      %s145 = smul.u32 %s36, %s144
      %s146 = sadd.s32 %s32, %s145
      %s147 = ssub.s32 %s142, %s146
      %p148 = scmp.eq.s32.totalorder %s147, 0
      %s150 = sadd.s32 %s149, 1
      %s151 = scalar_select %p148, %s149, %s150
      %p154 = pneg %p148
      %p155 = scmp.eq.s32.totalorder %s17, 1
      %p156 = por %p154, %p155
      %p157 = scmp.ne.s32.totalorder %s149, %s152
      %p158 = scmp.eq.s32.totalorder %s17, 0
      %p159 = por %p157, %p158
      %p160 = scmp.ne.s32.totalorder %s149, %s152
      %p161 = scmp.eq.s32.totalorder %s22, 1
      %p162 = por %p160, %p161
      %p163 = scmp.ne.s32.totalorder %s152, %s153
      %p164 = scmp.eq.s32.totalorder %s22, 0
      %p165 = por %p163, %p164
      %p166 = scmp.ne.s32.totalorder %s152, %s153
      %p167 = scmp.eq.s32.totalorder %s23, 1
      %p168 = por %p166, %p167
      %p170 = scmp.ne.s32.totalorder %s153, %s169
      %p171 = scmp.eq.s32.totalorder %s23, 0
      %p172 = por %p170, %p171
      %s174 = sadd.s32 %s173, 1
      %p177 = scmp.eq.s32.totalorder %s17, 1
      %p178 = scmp.ne.s32.totalorder %s173, %s175
      %p179 = scmp.eq.s32.totalorder %s17, 0
      %p180 = por %p178, %p179
      %p181 = scmp.ne.s32.totalorder %s173, %s175
      %p182 = scmp.eq.s32.totalorder %s22, 1
      %p183 = por %p181, %p182
      %p184 = scmp.ne.s32.totalorder %s175, %s176
      %p185 = scmp.eq.s32.totalorder %s22, 0
      %p186 = por %p184, %p185
      %p187 = scmp.ne.s32.totalorder %s175, %s176
      %p188 = scmp.eq.s32.totalorder %s23, 1
      %p189 = por %p187, %p188
      %p191 = scmp.ne.s32.totalorder %s176, %s190
      %p192 = scmp.eq.s32.totalorder %s23, 0
      %p193 = por %p191, %p192
      %s195 = sadd.s32 %s194, 1
      %p198 = scmp.eq.s32.totalorder %s17, 1
      %p199 = scmp.ne.s32.totalorder %s194, %s196
      %p200 = scmp.eq.s32.totalorder %s17, 0
      %p201 = por %p199, %p200
      %p202 = scmp.ne.s32.totalorder %s194, %s196
      %p203 = scmp.eq.s32.totalorder %s22, 1
      %p204 = por %p202, %p203
      %p205 = scmp.ne.s32.totalorder %s196, %s197
      %p206 = scmp.eq.s32.totalorder %s22, 0
      %p207 = por %p205, %p206
      %p208 = scmp.ne.s32.totalorder %s196, %s197
      %p209 = scmp.eq.s32.totalorder %s23, 1
      %p210 = por %p208, %p209
      %p212 = scmp.ne.s32.totalorder %s197, %s211
      %p213 = scmp.eq.s32.totalorder %s23, 0
      %p214 = por %p212, %p213
      %p215 = scmp.le.s32.totalorder 1, %s17
      %p216 = scmp.lt.s32.totalorder %s17, 3
      %p217 = pnand %p215, %p216
      %p218 = pneg %p217
      // Predicated region
      $region9: #{tpu_custom_call.1} parent=5 // pred_check
        _
      $region10: #{tpu_custom_call.1} parent=5 // pred_check_branch
        %220 = sbr.rel (%p217) target = $region12
      $region11: #{tpu_custom_call.1} parent=5 // pred_region
        %s221 = ssub.s32 %s17, 1
      $region12: #{tpu_custom_call.1} parent=5 // pred_fallthru
        _
      %p222 = scmp.lt.s32.totalorder %s17, 2
      // Predicated region
      $region13: #{tpu_custom_call.1} parent=5 // pred_check
        %p223 = pneg %p222
      $region14: #{tpu_custom_call.1} parent=5 // pred_check_branch
        %225 = sbr.rel (%p223) target = $region16
      $region15: #{tpu_custom_call.1} parent=5 // pred_region
        // Predicated region
        $region17: #{tpu_custom_call.1} parent=15 // pred_check
          %p226 = pneg %p57
        $region18: #{tpu_custom_call.1} parent=15 // pred_check_branch
          %228 = sbr.rel (%p226) target = $region20
        $region19: #{tpu_custom_call.1} parent=15 // pred_region
          %s229 = sand.u32 %s47, 1
          %s230 = scalar_lea.sflag [#allocation4], %s229
          %s231 = sand.u32 %s47, 1
          %s232 = smul.addr %s231, 32
          %s233 = scalar_lea.vmem [#allocation3], %s232
          %s234 = smul.u32 %s25, 2
          %s235 = ssub.s32 0, %s234
          %s236 = smul.u32 %s24, %s235
          %s237 = sadd.s32 %s25, %s236
          %s239 = ssub.s32 512, 512
          %240 = vsyncadd %s230, %s239
          %s241 = smul.addr %s237, 4
          %s242 = smul.addr %s241, 128
          %s243 = scalar_lea.hbm %s0, %s242
          %s245 = sshll.u32 %s233, 4
          %s246 = int_to_ptr.vmem [resolvable:$true] %s245
          %248 = dma.hbm_to_vmem [thread:$0]  %s243, 512, %s246, %s230
        $region20: #{tpu_custom_call.1} parent=15 // pred_fallthru
          _
        // Predicated region
        $region21: #{tpu_custom_call.1} parent=15 // pred_check
          %p249 = pneg %p91
        $region22: #{tpu_custom_call.1} parent=15 // pred_check_branch
          %251 = sbr.rel (%p249) target = $region24
        $region23: #{tpu_custom_call.1} parent=15 // pred_region
          %s252 = smul.u32 %s25, 2
          %s253 = ssub.s32 0, %s252
          %s254 = smul.u32 %s24, %s253
          %s255 = sadd.s32 %s25, %s254
          %p256 = scmp.lt.s32.totalorder %s255, 0
          %s257 = scalar_select %p256, %s255, 0
          %s258 = scalar_lea.vmem %s1, %s257
          %s259 = smul.u32 %s25, 2
          %s260 = ssub.s32 0, %s259
          %s261 = smul.u32 %s24, %s260
          %s262 = sadd.s32 %s25, %s261
        $region24: #{tpu_custom_call.1} parent=15 // pred_fallthru
          _
        // Predicated region
        $region25: #{tpu_custom_call.1} parent=15 // pred_check
          %p263 = pneg %p125
        $region26: #{tpu_custom_call.1} parent=15 // pred_check_branch
          %265 = sbr.rel (%p263) target = $region28
        $region27: #{tpu_custom_call.1} parent=15 // pred_region
          %s266 = smul.u32 %s25, 2
          %s267 = ssub.s32 0, %s266
          %s268 = smul.u32 %s24, %s267
          %s269 = sadd.s32 %s25, %s268
          %p270 = scmp.lt.s32.totalorder %s269, 0
          %s271 = scalar_select %p270, %s269, 0
          %s272 = smul.addr %s271, 8
          %s273 = scalar_lea.vmem %s2, %s272
          %s274 = smul.u32 %s25, 2
          %s275 = ssub.s32 0, %s274
          %s276 = smul.u32 %s24, %s275
          %s277 = sadd.s32 %s25, %s276
        $region28: #{tpu_custom_call.1} parent=15 // pred_fallthru
          _
        // Predicated region
        $region29: #{tpu_custom_call.1} parent=15 // pred_check
          %p278 = pneg %p159
        $region30: #{tpu_custom_call.1} parent=15 // pred_check_branch
          %280 = sbr.rel (%p278) target = $region32
        $region31: #{tpu_custom_call.1} parent=15 // pred_region
          %s281 = smul.u32 %s25, 2
          %s282 = ssub.s32 0, %s281
          %s283 = smul.u32 %s24, %s282
          %s284 = sadd.s32 %s25, %s283
          %p285 = scmp.lt.s32.totalorder %s284, 0
          %s286 = scalar_select %p285, %s284, 0
          %s287 = smul.addr %s286, 8
          %s288 = scalar_lea.vmem %s3, %s287
          %s289 = smul.u32 %s25, 2
          %s290 = ssub.s32 0, %s289
          %s291 = smul.u32 %s24, %s290
          %s292 = sadd.s32 %s25, %s291
        $region32: #{tpu_custom_call.1} parent=15 // pred_fallthru
          _
      $region16: #{tpu_custom_call.1} parent=5 // pred_fallthru
        _
      %p293 = scmp.le.s32.totalorder 1, %s17
      %p294 = scmp.lt.s32.totalorder %s17, 3
      %p295 = pnand %p293, %p294
      %p296 = pneg %p295
      // Predicated region
      $region33: #{tpu_custom_call.1} parent=5 // pred_check
        _
      $region34: #{tpu_custom_call.1} parent=5 // pred_check_branch
        %298 = sbr.rel (%p295) target = $region36
      $region35: #{tpu_custom_call.1} parent=5 // pred_region
        %s299 = ssub.s32 %s17, 1
        %s300 = sand.u32 %s50, 1
        %s301 = scalar_lea.sflag [#allocation4], %s300
        %s302 = sand.u32 %s50, 1
        %s303 = smul.addr %s302, 32
        %s304 = scalar_lea.vmem [#allocation3], %s303
        // Predicated region
        $region37: #{tpu_custom_call.1} parent=35 // pred_check
          %p305 = pneg %p63
        $region38: #{tpu_custom_call.1} parent=35 // pred_check_branch
          %307 = sbr.rel (%p305) target = $region40
        $region39: #{tpu_custom_call.1} parent=35 // pred_region
          %308 = dma.done %s301, 512
        $region40: #{tpu_custom_call.1} parent=35 // pred_fallthru
          _
        %s309 = sand.u32 %s50, 1
        %s310 = scalar_lea.sflag [#allocation4], %s309
        %s311 = sand.u32 %s50, 1
        %s312 = smul.addr %s311, 32
        %s313 = scalar_lea.vmem [#allocation3], %s312
        %p314 = pneg %p63
        %p315 = pneg %p60
        %s316 = smul.u32 %s27, 2
        %s317 = ssub.s32 0, %s316
        %s318 = smul.u32 %s26, %s317
        %s319 = sadd.s32 %s27, %s318
        %p320 = scmp.lt.s32.totalorder %s319, 0
        %s321 = scalar_select %p320, %s319, 0
        %s322 = scalar_lea.vmem %s1, %s321
        %p323 = pneg %p97
        %p324 = pneg %p94
        %s325 = smul.u32 %s27, 2
        %s326 = ssub.s32 0, %s325
        %s327 = smul.u32 %s26, %s326
        %s328 = sadd.s32 %s27, %s327
        %p329 = scmp.lt.s32.totalorder %s328, 0
        %s330 = scalar_select %p329, %s328, 0
        %s331 = smul.addr %s330, 8
        %s332 = scalar_lea.vmem %s2, %s331
        %p333 = pneg %p131
        %p334 = pneg %p128
        %s335 = smul.u32 %s27, 2
        %s336 = ssub.s32 0, %s335
        %s337 = smul.u32 %s26, %s336
        %s338 = sadd.s32 %s27, %s337
        %p339 = scmp.lt.s32.totalorder %s338, 0
        %s340 = scalar_select %p339, %s338, 0
        %s341 = smul.addr %s340, 8
        %s342 = scalar_lea.vmem %s3, %s341
        %p343 = pneg %p165
        %p344 = pneg %p162
        %p345 = pneg %p186
        %p346 = pneg %p183
        %p347 = pneg %p207
        %p348 = pneg %p204
        %s349 = smul.u32 %s27, 2
        %s350 = ssub.s32 0, %s349
        %s351 = smul.u32 %s26, %s350
        %s352 = sadd.s32 %s27, %s351
        %s353 = smul.u32 %s27, 2
        %s354 = ssub.s32 0, %s353
        %s355 = smul.u32 %s26, %s354
        %s356 = sadd.s32 %s27, %s355
        %p357 = scmp.lt.s32.totalorder %s356, 0
        %s358 = scalar_select %p357, %s356, 0
        %s359 = scalar_lea.vmem %s1, %s358
        %s360 = smul.u32 %s27, 2
        %s361 = ssub.s32 0, %s360
        %s362 = smul.u32 %s26, %s361
        %s363 = sadd.s32 %s27, %s362
        %s364 = smul.u32 %s27, 2
        %s365 = ssub.s32 0, %s364
        %s366 = smul.u32 %s26, %s365
        %s367 = sadd.s32 %s27, %s366
        %p368 = scmp.lt.s32.totalorder %s367, 0
        %s369 = scalar_select %p368, %s367, 0
        %s370 = smul.addr %s369, 8
        %s371 = scalar_lea.vmem %s2, %s370
        %s372 = smul.u32 %s27, 2
        %s373 = ssub.s32 0, %s372
        %s374 = smul.u32 %s26, %s373
        %s375 = sadd.s32 %s27, %s374
        %s376 = smul.u32 %s27, 2
        %s377 = ssub.s32 0, %s376
        %s378 = smul.u32 %s26, %s377
        %s379 = sadd.s32 %s27, %s378
        %p380 = scmp.lt.s32.totalorder %s379, 0
        %s381 = scalar_select %p380, %s379, 0
        %s382 = smul.addr %s381, 8
        %s383 = scalar_lea.vmem %s3, %s382
        %s384 = smul.u32 %s27, 2
        %s385 = ssub.s32 0, %s384
        %s386 = smul.u32 %s26, %s385
        %s387 = sadd.s32 %s27, %s386
        %v388 = vld [vmem:[%s304] sm:$0xff]
        %v389 = vld [vmem:[%s304 + $0x8] sm:$0xff]
        %v390 = vld [vmem:[%s304 + $0x10] sm:$0xff]
        %v391 = vld [vmem:[%s304 + $0x18] sm:$0xff]
        %p392 = scmp.eq.s32.totalorder %s26, 0
        // Predicated region
        $region41: #{tpu_custom_call.1} parent=35 // pred_check
          %p393 = pneg %p392
        $region42: #{tpu_custom_call.1} parent=35 // pred_check_branch
          %395 = sbr.rel (%p393) target = $region44
        $region43: #{tpu_custom_call.1} parent=35 // pred_region
          %p396 = scmp.eq.s32.totalorder %s27, 0
          // Predicated region
          $region45: #{tpu_custom_call.1} parent=43 // pred_check
            %p397 = pneg %p396
          $region46: #{tpu_custom_call.1} parent=43 // pred_check_branch
            %399 = sbr.rel (%p397) target = $region48
          $region47: #{tpu_custom_call.1} parent=43 // pred_region
            %v400 = vlaneseq
            %vm401 = vcmp.ge.s32.totalorder %v400, 0
            %vm402 = vcmp.lt.s32.totalorder %v400, 512
            %vm403 = vmand %vm401, %vm402
            %404 = vst.msk [vmem:[#allocation7] sm:$0xf] %vm403, 0.0
            %vm405 = vcmask 0
            %406 = vst.msk [vmem:[#allocation2] sm:$0x1] %vm405, 0.0
          $region48: #{tpu_custom_call.1} parent=43 // pred_fallthru
            _
          %v407 = vld [vmem:[%s359] sm:$0x1]
          %v408 = vld [vmem:[#allocation7] sm:$0xf]
          %vm409 = vcmask 64512
          %v411 = vsel %vm409, %v407, 0
          %413 = vmatprep.subr.mxu0 0.0
          %414 = vmatpush1.msra.mxu0 0.0
          %415 = vmatprep.subr.mxu0 0.0
          %416 = vmatpush1.msra.mxu0 0.0
          %417 = vmatprep.subr.mxu0 0.0
          %418 = vmatpush1.msra.mxu0 0.0
          %419 = vmatprep.subr.mxu0 0.0
          %420 = vmatpush1.msra.mxu0 0.0
          %421 = vmatprep.subr.mxu0 0.0
          %422 = vmatpush1.msra.mxu0 0.0
          %423 = vmatprep.subr.mxu0 0.0
          %424 = vmatpush1.msra.mxu0 0.0
          %425 = vmatprep.subr.mxu0 0.0
          %426 = vmatpush1.msra.mxu0 0.0
          %427 = vmatprep.subr.mxu0 0.0
          %428 = vmatpush1.msra.mxu0 0.0
          %429 = vmatprep.subr.mxu0 0.0
          %430 = vmatpush1.msra.mxu0 0.0
          %431 = vmatprep.subr.mxu0 0.0
          %432 = vmatpush1.msra.mxu0 0.0
          %433 = vmatprep.subr.mxu0 0.0
          %434 = vmatpush1.msra.mxu0 0.0
          %435 = vmatprep.subr.mxu0 0.0
          %436 = vmatpush1.msra.mxu0 0.0
          %437 = vmatprep.subr.mxu0 0.0
          %438 = vmatpush1.msra.mxu0 0.0
          %439 = vmatprep.subr.mxu0 0.0
          %440 = vmatpush1.msra.mxu0 0.0
          %441 = vmatprep.subr.mxu0 0.0
          %442 = vmatpush1.msra.mxu0 0.0
          %v443 = vand.u32 %v389, 4294901760
          %444 = vmatprep.subr.mxu0 %v443
          %v445 = vand.u32 %v388, 4294901760
          %446 = vmatpush1.msra.mxu0 %v445
          %447 = vmatprep.subr.mxu0 0.0
          %448 = vmatpush2.msra.mxu0 0.0
          %449 = vmatprep.subr.mxu0 0.0
          %450 = vmatpush2.msra.mxu0 0.0
          %451 = vmatprep.subr.mxu0 0.0
          %452 = vmatpush2.msra.mxu0 0.0
          %453 = vmatprep.subr.mxu0 0.0
          %454 = vmatpush2.msra.mxu0 0.0
          %455 = vmatprep.subr.mxu0 0.0
          %456 = vmatpush2.msra.mxu0 0.0
          %457 = vmatprep.subr.mxu0 0.0
          %458 = vmatpush2.msra.mxu0 0.0
          %459 = vmatprep.subr.mxu0 0.0
          %460 = vmatpush2.msra.mxu0 0.0
          %461 = vmatprep.subr.mxu0 0.0
          %462 = vmatpush2.msra.mxu0 0.0
          %463 = vmatprep.subr.mxu0 0.0
          %464 = vmatpush2.msra.mxu0 0.0
          %465 = vmatprep.subr.mxu0 0.0
          %466 = vmatpush2.msra.mxu0 0.0
          %467 = vmatprep.subr.mxu0 0.0
          %468 = vmatpush2.msra.mxu0 0.0
          %469 = vmatprep.subr.mxu0 0.0
          %470 = vmatpush2.msra.mxu0 0.0
          %471 = vmatprep.subr.mxu0 0.0
          %472 = vmatpush2.msra.mxu0 0.0
          %473 = vmatprep.subr.mxu0 0.0
          %474 = vmatpush2.msra.mxu0 0.0
          %475 = vmatprep.subr.mxu0 0.0
          %476 = vmatpush2.msra.mxu0 0.0
          %477 = vmatprep.subr.mxu0 0.0
          %478 = vmatpush2.msra.mxu0 0.0
          %479 = vmatprep.mubr.f32.mxu0 0.0
          %v480 = vand.u32 %v411, 4294901760
          %v481 = vsub.f32 %v411, %v480
          %v482 = vand.u32 %v481, 4294901760
          %v483 = vsub.f32 %v481, %v482
          %v484 = vand.u32 %v483, 4294901760
          %485 = vmatmul.mubr.f32.gmra.mxu0 %v484
          %v486 = vpop.f32.mrf.mxu0
          %v487 = vadd.f32 0.0, %v486
          %v488 = vpop.f32.mrf.mxu0
          %v489 = vadd.f32 0.0, %v488
          %490 = vdwg.mxu0
          %491 = vmatprep.subr.mxu0 0.0
          %492 = vmatpush1.msra.mxu0 0.0
          %493 = vmatprep.subr.mxu0 0.0
          %494 = vmatpush1.msra.mxu0 0.0
          %495 = vmatprep.subr.mxu0 0.0
          %496 = vmatpush1.msra.mxu0 0.0
          %497 = vmatprep.subr.mxu0 0.0
          %498 = vmatpush1.msra.mxu0 0.0
          %499 = vmatprep.subr.mxu0 0.0
          %500 = vmatpush1.msra.mxu0 0.0
          %501 = vmatprep.subr.mxu0 0.0
          %502 = vmatpush1.msra.mxu0 0.0
          %503 = vmatprep.subr.mxu0 0.0
          %504 = vmatpush1.msra.mxu0 0.0
          %505 = vmatprep.subr.mxu0 0.0
          %506 = vmatpush1.msra.mxu0 0.0
          %507 = vmatprep.subr.mxu0 0.0
          %508 = vmatpush1.msra.mxu0 0.0
          %509 = vmatprep.subr.mxu0 0.0
          %510 = vmatpush1.msra.mxu0 0.0
          %511 = vmatprep.subr.mxu0 0.0
          %512 = vmatpush1.msra.mxu0 0.0
          %513 = vmatprep.subr.mxu0 0.0
          %514 = vmatpush1.msra.mxu0 0.0
          %515 = vmatprep.subr.mxu0 0.0
          %516 = vmatpush1.msra.mxu0 0.0
          %517 = vmatprep.subr.mxu0 0.0
          %518 = vmatpush1.msra.mxu0 0.0
          %519 = vmatprep.subr.mxu0 0.0
          %520 = vmatpush1.msra.mxu0 0.0
          %v521 = vand.u32 %v389, 4294901760
          %v522 = vsub.f32 %v389, %v521
          %v523 = vand.u32 %v522, 4294901760
          %v524 = vsub.f32 %v522, %v523
          %v525 = vand.u32 %v524, 4294901760
          %526 = vmatprep.subr.mxu0 %v525
          %v527 = vand.u32 %v388, 4294901760
          %v528 = vsub.f32 %v388, %v527
          %v529 = vand.u32 %v528, 4294901760
          %v530 = vsub.f32 %v528, %v529
          %v531 = vand.u32 %v530, 4294901760
          %532 = vmatpush1.msra.mxu0 %v531
          %533 = vmatprep.subr.mxu0 0.0
          %534 = vmatpush2.msra.mxu0 0.0
          %535 = vmatprep.subr.mxu0 0.0
          %536 = vmatpush2.msra.mxu0 0.0
          %537 = vmatprep.subr.mxu0 0.0
          %538 = vmatpush2.msra.mxu0 0.0
          %539 = vmatprep.subr.mxu0 0.0
          %540 = vmatpush2.msra.mxu0 0.0
          %541 = vmatprep.subr.mxu0 0.0
          %542 = vmatpush2.msra.mxu0 0.0
          %543 = vmatprep.subr.mxu0 0.0
          %544 = vmatpush2.msra.mxu0 0.0
          %545 = vmatprep.subr.mxu0 0.0
          %546 = vmatpush2.msra.mxu0 0.0
          %547 = vmatprep.subr.mxu0 0.0
          %548 = vmatpush2.msra.mxu0 0.0
          %549 = vmatprep.subr.mxu0 0.0
          %550 = vmatpush2.msra.mxu0 0.0
          %551 = vmatprep.subr.mxu0 0.0
          %552 = vmatpush2.msra.mxu0 0.0
          %553 = vmatprep.subr.mxu0 0.0
          %554 = vmatpush2.msra.mxu0 0.0
          %555 = vmatprep.subr.mxu0 0.0
          %556 = vmatpush2.msra.mxu0 0.0
          %557 = vmatprep.subr.mxu0 0.0
          %558 = vmatpush2.msra.mxu0 0.0
          %559 = vmatprep.subr.mxu0 0.0
          %560 = vmatpush2.msra.mxu0 0.0
          %561 = vmatprep.subr.mxu0 0.0
          %562 = vmatpush2.msra.mxu0 0.0
          %563 = vmatprep.subr.mxu0 0.0
          %564 = vmatpush2.msra.mxu0 0.0
          %565 = vmatprep.mubr.f32.mxu0 0.0
          %v566 = vand.u32 %v411, 4294901760
          %567 = vmatmul.mubr.f32.gmra.mxu0 %v566
          %v568 = vpop.f32.mrf.mxu0
          %v569 = vadd.f32 %v487, %v568
          %v570 = vpop.f32.mrf.mxu0
          %v571 = vadd.f32 %v489, %v570
          %572 = vdwg.mxu0
          %573 = vmatprep.subr.mxu0 0.0
          %574 = vmatpush1.msra.mxu0 0.0
          %575 = vmatprep.subr.mxu0 0.0
          %576 = vmatpush1.msra.mxu0 0.0
          %577 = vmatprep.subr.mxu0 0.0
          %578 = vmatpush1.msra.mxu0 0.0
          %579 = vmatprep.subr.mxu0 0.0
          %580 = vmatpush1.msra.mxu0 0.0
          %581 = vmatprep.subr.mxu0 0.0
          %582 = vmatpush1.msra.mxu0 0.0
          %583 = vmatprep.subr.mxu0 0.0
          %584 = vmatpush1.msra.mxu0 0.0
          %585 = vmatprep.subr.mxu0 0.0
          %586 = vmatpush1.msra.mxu0 0.0
          %587 = vmatprep.subr.mxu0 0.0
          %588 = vmatpush1.msra.mxu0 0.0
          %589 = vmatprep.subr.mxu0 0.0
          %590 = vmatpush1.msra.mxu0 0.0
          %591 = vmatprep.subr.mxu0 0.0
          %592 = vmatpush1.msra.mxu0 0.0
          %593 = vmatprep.subr.mxu0 0.0
          %594 = vmatpush1.msra.mxu0 0.0
          %595 = vmatprep.subr.mxu0 0.0
          %596 = vmatpush1.msra.mxu0 0.0
          %597 = vmatprep.subr.mxu0 0.0
          %598 = vmatpush1.msra.mxu0 0.0
          %599 = vmatprep.subr.mxu0 0.0
          %600 = vmatpush1.msra.mxu0 0.0
          %601 = vmatprep.subr.mxu0 0.0
          %602 = vmatpush1.msra.mxu0 0.0
          %v603 = vand.u32 %v389, 4294901760
          %v604 = vsub.f32 %v389, %v603
          %605 = vmatprep.subr.mxu0 %v604
          %v606 = vand.u32 %v388, 4294901760
          %v607 = vsub.f32 %v388, %v606
          %608 = vmatpush1.msra.mxu0 %v607
          %609 = vmatprep.subr.mxu0 0.0
          %610 = vmatpush2.msra.mxu0 0.0
          %611 = vmatprep.subr.mxu0 0.0
          %612 = vmatpush2.msra.mxu0 0.0
          %613 = vmatprep.subr.mxu0 0.0
          %614 = vmatpush2.msra.mxu0 0.0
          %615 = vmatprep.subr.mxu0 0.0
          %616 = vmatpush2.msra.mxu0 0.0
          %617 = vmatprep.subr.mxu0 0.0
          %618 = vmatpush2.msra.mxu0 0.0
          %619 = vmatprep.subr.mxu0 0.0
          %620 = vmatpush2.msra.mxu0 0.0
          %621 = vmatprep.subr.mxu0 0.0
          %622 = vmatpush2.msra.mxu0 0.0
          %623 = vmatprep.subr.mxu0 0.0
          %624 = vmatpush2.msra.mxu0 0.0
          %625 = vmatprep.subr.mxu0 0.0
          %626 = vmatpush2.msra.mxu0 0.0
          %627 = vmatprep.subr.mxu0 0.0
          %628 = vmatpush2.msra.mxu0 0.0
          %629 = vmatprep.subr.mxu0 0.0
          %630 = vmatpush2.msra.mxu0 0.0
          %631 = vmatprep.subr.mxu0 0.0
          %632 = vmatpush2.msra.mxu0 0.0
          %633 = vmatprep.subr.mxu0 0.0
          %634 = vmatpush2.msra.mxu0 0.0
          %635 = vmatprep.subr.mxu0 0.0
          %636 = vmatpush2.msra.mxu0 0.0
          %637 = vmatprep.subr.mxu0 0.0
          %638 = vmatpush2.msra.mxu0 0.0
          %639 = vmatprep.subr.mxu0 0.0
          %640 = vmatpush2.msra.mxu0 0.0
          %641 = vmatprep.mubr.f32.mxu0 0.0
          %v642 = vand.u32 %v411, 4294901760
          %v643 = vsub.f32 %v411, %v642
          %644 = vmatmul.mubr.f32.gmra.mxu0 %v643
          %v645 = vpop.f32.mrf.mxu0
          %v646 = vadd.f32 %v569, %v645
          %v647 = vpop.f32.mrf.mxu0
          %v648 = vadd.f32 %v571, %v647
          %649 = vdwg.mxu0
          %650 = vmatprep.subr.mxu0 0.0
          %651 = vmatpush1.msra.mxu0 0.0
          %652 = vmatprep.subr.mxu0 0.0
          %653 = vmatpush1.msra.mxu0 0.0
          %654 = vmatprep.subr.mxu0 0.0
          %655 = vmatpush1.msra.mxu0 0.0
          %656 = vmatprep.subr.mxu0 0.0
          %657 = vmatpush1.msra.mxu0 0.0
          %658 = vmatprep.subr.mxu0 0.0
          %659 = vmatpush1.msra.mxu0 0.0
          %660 = vmatprep.subr.mxu0 0.0
          %661 = vmatpush1.msra.mxu0 0.0
          %662 = vmatprep.subr.mxu0 0.0
          %663 = vmatpush1.msra.mxu0 0.0
          %664 = vmatprep.subr.mxu0 0.0
          %665 = vmatpush1.msra.mxu0 0.0
          %666 = vmatprep.subr.mxu0 0.0
          %667 = vmatpush1.msra.mxu0 0.0
          %668 = vmatprep.subr.mxu0 0.0
          %669 = vmatpush1.msra.mxu0 0.0
          %670 = vmatprep.subr.mxu0 0.0
          %671 = vmatpush1.msra.mxu0 0.0
          %672 = vmatprep.subr.mxu0 0.0
          %673 = vmatpush1.msra.mxu0 0.0
          %674 = vmatprep.subr.mxu0 0.0
          %675 = vmatpush1.msra.mxu0 0.0
          %676 = vmatprep.subr.mxu0 0.0
          %677 = vmatpush1.msra.mxu0 0.0
          %678 = vmatprep.subr.mxu0 0.0
          %679 = vmatpush1.msra.mxu0 0.0
          %v680 = vand.u32 %v389, 4294901760
          %681 = vmatprep.subr.mxu0 %v680
          %v682 = vand.u32 %v388, 4294901760
          %683 = vmatpush1.msra.mxu0 %v682
          %684 = vmatprep.subr.mxu0 0.0
          %685 = vmatpush2.msra.mxu0 0.0
          %686 = vmatprep.subr.mxu0 0.0
          %687 = vmatpush2.msra.mxu0 0.0
          %688 = vmatprep.subr.mxu0 0.0
          %689 = vmatpush2.msra.mxu0 0.0
          %690 = vmatprep.subr.mxu0 0.0
          %691 = vmatpush2.msra.mxu0 0.0
          %692 = vmatprep.subr.mxu0 0.0
          %693 = vmatpush2.msra.mxu0 0.0
          %694 = vmatprep.subr.mxu0 0.0
          %695 = vmatpush2.msra.mxu0 0.0
          %696 = vmatprep.subr.mxu0 0.0
          %697 = vmatpush2.msra.mxu0 0.0
          %698 = vmatprep.subr.mxu0 0.0
          %699 = vmatpush2.msra.mxu0 0.0
          %700 = vmatprep.subr.mxu0 0.0
          %701 = vmatpush2.msra.mxu0 0.0
          %702 = vmatprep.subr.mxu0 0.0
          %703 = vmatpush2.msra.mxu0 0.0
          %704 = vmatprep.subr.mxu0 0.0
          %705 = vmatpush2.msra.mxu0 0.0
          %706 = vmatprep.subr.mxu0 0.0
          %707 = vmatpush2.msra.mxu0 0.0
          %708 = vmatprep.subr.mxu0 0.0
          %709 = vmatpush2.msra.mxu0 0.0
          %710 = vmatprep.subr.mxu0 0.0
          %711 = vmatpush2.msra.mxu0 0.0
          %712 = vmatprep.subr.mxu0 0.0
          %713 = vmatpush2.msra.mxu0 0.0
          %714 = vmatprep.subr.mxu0 0.0
          %715 = vmatpush2.msra.mxu0 0.0
          %716 = vmatprep.mubr.f32.mxu0 0.0
          %v717 = vand.u32 %v411, 4294901760
          %v718 = vsub.f32 %v411, %v717
          %v719 = vand.u32 %v718, 4294901760
          %720 = vmatmul.mubr.f32.gmra.mxu0 %v719
          %v721 = vpop.f32.mrf.mxu0
          %v722 = vadd.f32 %v646, %v721
          %v723 = vpop.f32.mrf.mxu0
          %v724 = vadd.f32 %v648, %v723
          %725 = vdwg.mxu0
          %726 = vmatprep.subr.mxu0 0.0
          %727 = vmatpush1.msra.mxu0 0.0
          %728 = vmatprep.subr.mxu0 0.0
          %729 = vmatpush1.msra.mxu0 0.0
          %730 = vmatprep.subr.mxu0 0.0
          %731 = vmatpush1.msra.mxu0 0.0
          %732 = vmatprep.subr.mxu0 0.0
          %733 = vmatpush1.msra.mxu0 0.0
          %734 = vmatprep.subr.mxu0 0.0
          %735 = vmatpush1.msra.mxu0 0.0
          %736 = vmatprep.subr.mxu0 0.0
          %737 = vmatpush1.msra.mxu0 0.0
          %738 = vmatprep.subr.mxu0 0.0
          %739 = vmatpush1.msra.mxu0 0.0
          %740 = vmatprep.subr.mxu0 0.0
          %741 = vmatpush1.msra.mxu0 0.0
          %742 = vmatprep.subr.mxu0 0.0
          %743 = vmatpush1.msra.mxu0 0.0
          %744 = vmatprep.subr.mxu0 0.0
          %745 = vmatpush1.msra.mxu0 0.0
          %746 = vmatprep.subr.mxu0 0.0
          %747 = vmatpush1.msra.mxu0 0.0
          %748 = vmatprep.subr.mxu0 0.0
          %749 = vmatpush1.msra.mxu0 0.0
          %750 = vmatprep.subr.mxu0 0.0
          %751 = vmatpush1.msra.mxu0 0.0
          %752 = vmatprep.subr.mxu0 0.0
          %753 = vmatpush1.msra.mxu0 0.0
          %754 = vmatprep.subr.mxu0 0.0
          %755 = vmatpush1.msra.mxu0 0.0
          %v756 = vand.u32 %v389, 4294901760
          %v757 = vsub.f32 %v389, %v756
          %v758 = vand.u32 %v757, 4294901760
          %759 = vmatprep.subr.mxu0 %v758
          %v760 = vand.u32 %v388, 4294901760
          %v761 = vsub.f32 %v388, %v760
          %v762 = vand.u32 %v761, 4294901760
          %763 = vmatpush1.msra.mxu0 %v762
          %764 = vmatprep.subr.mxu0 0.0
          %765 = vmatpush2.msra.mxu0 0.0
          %766 = vmatprep.subr.mxu0 0.0
          %767 = vmatpush2.msra.mxu0 0.0
          %768 = vmatprep.subr.mxu0 0.0
          %769 = vmatpush2.msra.mxu0 0.0
          %770 = vmatprep.subr.mxu0 0.0
          %771 = vmatpush2.msra.mxu0 0.0
          %772 = vmatprep.subr.mxu0 0.0
          %773 = vmatpush2.msra.mxu0 0.0
          %774 = vmatprep.subr.mxu0 0.0
          %775 = vmatpush2.msra.mxu0 0.0
          %776 = vmatprep.subr.mxu0 0.0
          %777 = vmatpush2.msra.mxu0 0.0
          %778 = vmatprep.subr.mxu0 0.0
          %779 = vmatpush2.msra.mxu0 0.0
          %780 = vmatprep.subr.mxu0 0.0
          %781 = vmatpush2.msra.mxu0 0.0
          %782 = vmatprep.subr.mxu0 0.0
          %783 = vmatpush2.msra.mxu0 0.0
          %784 = vmatprep.subr.mxu0 0.0
          %785 = vmatpush2.msra.mxu0 0.0
          %786 = vmatprep.subr.mxu0 0.0
          %787 = vmatpush2.msra.mxu0 0.0
          %788 = vmatprep.subr.mxu0 0.0
          %789 = vmatpush2.msra.mxu0 0.0
          %790 = vmatprep.subr.mxu0 0.0
          %791 = vmatpush2.msra.mxu0 0.0
          %792 = vmatprep.subr.mxu0 0.0
          %793 = vmatpush2.msra.mxu0 0.0
          %794 = vmatprep.subr.mxu0 0.0
          %795 = vmatpush2.msra.mxu0 0.0
          %796 = vmatprep.mubr.f32.mxu0 0.0
          %v797 = vand.u32 %v411, 4294901760
          %798 = vmatmul.mubr.f32.gmra.mxu0 %v797
          %v799 = vpop.f32.mrf.mxu0
          %v800 = vadd.f32 %v722, %v799
          %v801 = vpop.f32.mrf.mxu0
          %v802 = vadd.f32 %v724, %v801
          %803 = vdwg.mxu0
          %804 = vmatprep.subr.mxu0 0.0
          %805 = vmatpush1.msra.mxu0 0.0
          %806 = vmatprep.subr.mxu0 0.0
          %807 = vmatpush1.msra.mxu0 0.0
          %808 = vmatprep.subr.mxu0 0.0
          %809 = vmatpush1.msra.mxu0 0.0
          %810 = vmatprep.subr.mxu0 0.0
          %811 = vmatpush1.msra.mxu0 0.0
          %812 = vmatprep.subr.mxu0 0.0
          %813 = vmatpush1.msra.mxu0 0.0
          %814 = vmatprep.subr.mxu0 0.0
          %815 = vmatpush1.msra.mxu0 0.0
          %816 = vmatprep.subr.mxu0 0.0
          %817 = vmatpush1.msra.mxu0 0.0
          %818 = vmatprep.subr.mxu0 0.0
          %819 = vmatpush1.msra.mxu0 0.0
          %820 = vmatprep.subr.mxu0 0.0
          %821 = vmatpush1.msra.mxu0 0.0
          %822 = vmatprep.subr.mxu0 0.0
          %823 = vmatpush1.msra.mxu0 0.0
          %824 = vmatprep.subr.mxu0 0.0
          %825 = vmatpush1.msra.mxu0 0.0
          %826 = vmatprep.subr.mxu0 0.0
          %827 = vmatpush1.msra.mxu0 0.0
          %828 = vmatprep.subr.mxu0 0.0
          %829 = vmatpush1.msra.mxu0 0.0
          %830 = vmatprep.subr.mxu0 0.0
          %831 = vmatpush1.msra.mxu0 0.0
          %832 = vmatprep.subr.mxu0 0.0
          %833 = vmatpush1.msra.mxu0 0.0
          %v834 = vand.u32 %v389, 4294901760
          %835 = vmatprep.subr.mxu0 %v834
          %v836 = vand.u32 %v388, 4294901760
          %837 = vmatpush1.msra.mxu0 %v836
          %838 = vmatprep.subr.mxu0 0.0
          %839 = vmatpush2.msra.mxu0 0.0
          %840 = vmatprep.subr.mxu0 0.0
          %841 = vmatpush2.msra.mxu0 0.0
          %842 = vmatprep.subr.mxu0 0.0
          %843 = vmatpush2.msra.mxu0 0.0
          %844 = vmatprep.subr.mxu0 0.0
          %845 = vmatpush2.msra.mxu0 0.0
          %846 = vmatprep.subr.mxu0 0.0
          %847 = vmatpush2.msra.mxu0 0.0
          %848 = vmatprep.subr.mxu0 0.0
          %849 = vmatpush2.msra.mxu0 0.0
          %850 = vmatprep.subr.mxu0 0.0
          %851 = vmatpush2.msra.mxu0 0.0
          %852 = vmatprep.subr.mxu0 0.0
          %853 = vmatpush2.msra.mxu0 0.0
          %854 = vmatprep.subr.mxu0 0.0
          %855 = vmatpush2.msra.mxu0 0.0
          %856 = vmatprep.subr.mxu0 0.0
          %857 = vmatpush2.msra.mxu0 0.0
          %858 = vmatprep.subr.mxu0 0.0
          %859 = vmatpush2.msra.mxu0 0.0
          %860 = vmatprep.subr.mxu0 0.0
          %861 = vmatpush2.msra.mxu0 0.0
          %862 = vmatprep.subr.mxu0 0.0
          %863 = vmatpush2.msra.mxu0 0.0
          %864 = vmatprep.subr.mxu0 0.0
          %865 = vmatpush2.msra.mxu0 0.0
          %866 = vmatprep.subr.mxu0 0.0
          %867 = vmatpush2.msra.mxu0 0.0
          %868 = vmatprep.subr.mxu0 0.0
          %869 = vmatpush2.msra.mxu0 0.0
          %870 = vmatprep.mubr.f32.mxu0 0.0
          %v871 = vand.u32 %v411, 4294901760
          %872 = vmatmul.mubr.f32.gmra.mxu0 %v871
          %v873 = vpop.f32.mrf.mxu0
          %v874 = vadd.f32 %v800, %v873
          %v875 = vpop.f32.mrf.mxu0
          %v876 = vadd.f32 %v802, %v875
          %877 = vdwg.mxu0
          %878 = vmatprep.subr.mxu0 0.0
          %879 = vmatpush1.msra.mxu0 0.0
          %880 = vmatprep.subr.mxu0 0.0
          %881 = vmatpush1.msra.mxu0 0.0
          %882 = vmatprep.subr.mxu0 0.0
          %883 = vmatpush1.msra.mxu0 0.0
          %884 = vmatprep.subr.mxu0 0.0
          %885 = vmatpush1.msra.mxu0 0.0
          %886 = vmatprep.subr.mxu0 0.0
          %887 = vmatpush1.msra.mxu0 0.0
          %888 = vmatprep.subr.mxu0 0.0
          %889 = vmatpush1.msra.mxu0 0.0
          %890 = vmatprep.subr.mxu0 0.0
          %891 = vmatpush1.msra.mxu0 0.0
          %892 = vmatprep.subr.mxu0 0.0
          %893 = vmatpush1.msra.mxu0 0.0
          %894 = vmatprep.subr.mxu0 0.0
          %895 = vmatpush1.msra.mxu0 0.0
          %896 = vmatprep.subr.mxu0 0.0
          %897 = vmatpush1.msra.mxu0 0.0
          %898 = vmatprep.subr.mxu0 0.0
          %899 = vmatpush1.msra.mxu0 0.0
          %900 = vmatprep.subr.mxu0 0.0
          %901 = vmatpush1.msra.mxu0 0.0
          %902 = vmatprep.subr.mxu0 0.0
          %903 = vmatpush1.msra.mxu0 0.0
          %904 = vmatprep.subr.mxu0 0.0
          %905 = vmatpush1.msra.mxu0 0.0
          %906 = vmatprep.subr.mxu0 0.0
          %907 = vmatpush1.msra.mxu0 0.0
          %v908 = vand.u32 %v391, 4294901760
          %909 = vmatprep.subr.mxu0 %v908
          %v910 = vand.u32 %v390, 4294901760
          %911 = vmatpush1.msra.mxu0 %v910
          %912 = vmatprep.subr.mxu0 0.0
          %913 = vmatpush2.msra.mxu0 0.0
          %914 = vmatprep.subr.mxu0 0.0
          %915 = vmatpush2.msra.mxu0 0.0
          %916 = vmatprep.subr.mxu0 0.0
          %917 = vmatpush2.msra.mxu0 0.0
          %918 = vmatprep.subr.mxu0 0.0
          %919 = vmatpush2.msra.mxu0 0.0
          %920 = vmatprep.subr.mxu0 0.0
          %921 = vmatpush2.msra.mxu0 0.0
          %922 = vmatprep.subr.mxu0 0.0
          %923 = vmatpush2.msra.mxu0 0.0
          %924 = vmatprep.subr.mxu0 0.0
          %925 = vmatpush2.msra.mxu0 0.0
          %926 = vmatprep.subr.mxu0 0.0
          %927 = vmatpush2.msra.mxu0 0.0
          %928 = vmatprep.subr.mxu0 0.0
          %929 = vmatpush2.msra.mxu0 0.0
          %930 = vmatprep.subr.mxu0 0.0
          %931 = vmatpush2.msra.mxu0 0.0
          %932 = vmatprep.subr.mxu0 0.0
          %933 = vmatpush2.msra.mxu0 0.0
          %934 = vmatprep.subr.mxu0 0.0
          %935 = vmatpush2.msra.mxu0 0.0
          %936 = vmatprep.subr.mxu0 0.0
          %937 = vmatpush2.msra.mxu0 0.0
          %938 = vmatprep.subr.mxu0 0.0
          %939 = vmatpush2.msra.mxu0 0.0
          %940 = vmatprep.subr.mxu0 0.0
          %941 = vmatpush2.msra.mxu0 0.0
          %942 = vmatprep.subr.mxu0 0.0
          %943 = vmatpush2.msra.mxu0 0.0
          %944 = vmatprep.mubr.f32.mxu0 0.0
          %v945 = vand.u32 %v411, 4294901760
          %v946 = vsub.f32 %v411, %v945
          %v947 = vand.u32 %v946, 4294901760
          %v948 = vsub.f32 %v946, %v947
          %v949 = vand.u32 %v948, 4294901760
          %950 = vmatmul.mubr.f32.gmra.mxu0 %v949
          %v951 = vpop.f32.mrf.mxu0
          %v952 = vadd.f32 0.0, %v951
          %v953 = vpop.f32.mrf.mxu0
          %v954 = vadd.f32 0.0, %v953
          %955 = vdwg.mxu0
          %956 = vmatprep.subr.mxu0 0.0
          %957 = vmatpush1.msra.mxu0 0.0
          %958 = vmatprep.subr.mxu0 0.0
          %959 = vmatpush1.msra.mxu0 0.0
          %960 = vmatprep.subr.mxu0 0.0
          %961 = vmatpush1.msra.mxu0 0.0
          %962 = vmatprep.subr.mxu0 0.0
          %963 = vmatpush1.msra.mxu0 0.0
          %964 = vmatprep.subr.mxu0 0.0
          %965 = vmatpush1.msra.mxu0 0.0
          %966 = vmatprep.subr.mxu0 0.0
          %967 = vmatpush1.msra.mxu0 0.0
          %968 = vmatprep.subr.mxu0 0.0
          %969 = vmatpush1.msra.mxu0 0.0
          %970 = vmatprep.subr.mxu0 0.0
          %971 = vmatpush1.msra.mxu0 0.0
          %972 = vmatprep.subr.mxu0 0.0
          %973 = vmatpush1.msra.mxu0 0.0
          %974 = vmatprep.subr.mxu0 0.0
          %975 = vmatpush1.msra.mxu0 0.0
          %976 = vmatprep.subr.mxu0 0.0
          %977 = vmatpush1.msra.mxu0 0.0
          %978 = vmatprep.subr.mxu0 0.0
          %979 = vmatpush1.msra.mxu0 0.0
          %980 = vmatprep.subr.mxu0 0.0
          %981 = vmatpush1.msra.mxu0 0.0
          %982 = vmatprep.subr.mxu0 0.0
          %983 = vmatpush1.msra.mxu0 0.0
          %984 = vmatprep.subr.mxu0 0.0
          %985 = vmatpush1.msra.mxu0 0.0
          %v986 = vand.u32 %v391, 4294901760
          %v987 = vsub.f32 %v391, %v986
          %v988 = vand.u32 %v987, 4294901760
          %v989 = vsub.f32 %v987, %v988
          %v990 = vand.u32 %v989, 4294901760
          %991 = vmatprep.subr.mxu0 %v990
          %v992 = vand.u32 %v390, 4294901760
          %v993 = vsub.f32 %v390, %v992
          %v994 = vand.u32 %v993, 4294901760
          %v995 = vsub.f32 %v993, %v994
          %v996 = vand.u32 %v995, 4294901760
          %997 = vmatpush1.msra.mxu0 %v996
          %998 = vmatprep.subr.mxu0 0.0
          %999 = vmatpush2.msra.mxu0 0.0
          %1000 = vmatprep.subr.mxu0 0.0
          %1001 = vmatpush2.msra.mxu0 0.0
          %1002 = vmatprep.subr.mxu0 0.0
          %1003 = vmatpush2.msra.mxu0 0.0
          %1004 = vmatprep.subr.mxu0 0.0
          %1005 = vmatpush2.msra.mxu0 0.0
          %1006 = vmatprep.subr.mxu0 0.0
          %1007 = vmatpush2.msra.mxu0 0.0
          %1008 = vmatprep.subr.mxu0 0.0
          %1009 = vmatpush2.msra.mxu0 0.0
          %1010 = vmatprep.subr.mxu0 0.0
          %1011 = vmatpush2.msra.mxu0 0.0
          %1012 = vmatprep.subr.mxu0 0.0
          %1013 = vmatpush2.msra.mxu0 0.0
          %1014 = vmatprep.subr.mxu0 0.0
          %1015 = vmatpush2.msra.mxu0 0.0
          %1016 = vmatprep.subr.mxu0 0.0
          %1017 = vmatpush2.msra.mxu0 0.0
          %1018 = vmatprep.subr.mxu0 0.0
          %1019 = vmatpush2.msra.mxu0 0.0
          %1020 = vmatprep.subr.mxu0 0.0
          %1021 = vmatpush2.msra.mxu0 0.0
          %1022 = vmatprep.subr.mxu0 0.0
          %1023 = vmatpush2.msra.mxu0 0.0
          %1024 = vmatprep.subr.mxu0 0.0
          %1025 = vmatpush2.msra.mxu0 0.0
          %1026 = vmatprep.subr.mxu0 0.0
          %1027 = vmatpush2.msra.mxu0 0.0
          %1028 = vmatprep.subr.mxu0 0.0
          %1029 = vmatpush2.msra.mxu0 0.0
          %1030 = vmatprep.mubr.f32.mxu0 0.0
          %v1031 = vand.u32 %v411, 4294901760
          %1032 = vmatmul.mubr.f32.gmra.mxu0 %v1031
          %v1033 = vpop.f32.mrf.mxu0
          %v1034 = vadd.f32 %v952, %v1033
          %v1035 = vpop.f32.mrf.mxu0
          %v1036 = vadd.f32 %v954, %v1035
          %1037 = vdwg.mxu0
          %1038 = vmatprep.subr.mxu0 0.0
          %1039 = vmatpush1.msra.mxu0 0.0
          %1040 = vmatprep.subr.mxu0 0.0
          %1041 = vmatpush1.msra.mxu0 0.0
          %1042 = vmatprep.subr.mxu0 0.0
          %1043 = vmatpush1.msra.mxu0 0.0
          %1044 = vmatprep.subr.mxu0 0.0
          %1045 = vmatpush1.msra.mxu0 0.0
          %1046 = vmatprep.subr.mxu0 0.0
          %1047 = vmatpush1.msra.mxu0 0.0
          %1048 = vmatprep.subr.mxu0 0.0
          %1049 = vmatpush1.msra.mxu0 0.0
          %1050 = vmatprep.subr.mxu0 0.0
          %1051 = vmatpush1.msra.mxu0 0.0
          %1052 = vmatprep.subr.mxu0 0.0
          %1053 = vmatpush1.msra.mxu0 0.0
          %1054 = vmatprep.subr.mxu0 0.0
          %1055 = vmatpush1.msra.mxu0 0.0
          %1056 = vmatprep.subr.mxu0 0.0
          %1057 = vmatpush1.msra.mxu0 0.0
          %1058 = vmatprep.subr.mxu0 0.0
          %1059 = vmatpush1.msra.mxu0 0.0
          %1060 = vmatprep.subr.mxu0 0.0
          %1061 = vmatpush1.msra.mxu0 0.0
          %1062 = vmatprep.subr.mxu0 0.0
          %1063 = vmatpush1.msra.mxu0 0.0
          %1064 = vmatprep.subr.mxu0 0.0
          %1065 = vmatpush1.msra.mxu0 0.0
          %1066 = vmatprep.subr.mxu0 0.0
          %1067 = vmatpush1.msra.mxu0 0.0
          %v1068 = vand.u32 %v391, 4294901760
          %v1069 = vsub.f32 %v391, %v1068
          %1070 = vmatprep.subr.mxu0 %v1069
          %v1071 = vand.u32 %v390, 4294901760
          %v1072 = vsub.f32 %v390, %v1071
          %1073 = vmatpush1.msra.mxu0 %v1072
          %1074 = vmatprep.subr.mxu0 0.0
          %1075 = vmatpush2.msra.mxu0 0.0
          %1076 = vmatprep.subr.mxu0 0.0
          %1077 = vmatpush2.msra.mxu0 0.0
          %1078 = vmatprep.subr.mxu0 0.0
          %1079 = vmatpush2.msra.mxu0 0.0
          %1080 = vmatprep.subr.mxu0 0.0
          %1081 = vmatpush2.msra.mxu0 0.0
          %1082 = vmatprep.subr.mxu0 0.0
          %1083 = vmatpush2.msra.mxu0 0.0
          %1084 = vmatprep.subr.mxu0 0.0
          %1085 = vmatpush2.msra.mxu0 0.0
          %1086 = vmatprep.subr.mxu0 0.0
          %1087 = vmatpush2.msra.mxu0 0.0
          %1088 = vmatprep.subr.mxu0 0.0
          %1089 = vmatpush2.msra.mxu0 0.0
          %1090 = vmatprep.subr.mxu0 0.0
          %1091 = vmatpush2.msra.mxu0 0.0
          %1092 = vmatprep.subr.mxu0 0.0
          %1093 = vmatpush2.msra.mxu0 0.0
          %1094 = vmatprep.subr.mxu0 0.0
          %1095 = vmatpush2.msra.mxu0 0.0
          %1096 = vmatprep.subr.mxu0 0.0
          %1097 = vmatpush2.msra.mxu0 0.0
          %1098 = vmatprep.subr.mxu0 0.0
          %1099 = vmatpush2.msra.mxu0 0.0
          %1100 = vmatprep.subr.mxu0 0.0
          %1101 = vmatpush2.msra.mxu0 0.0
          %1102 = vmatprep.subr.mxu0 0.0
          %1103 = vmatpush2.msra.mxu0 0.0
          %1104 = vmatprep.subr.mxu0 0.0
          %1105 = vmatpush2.msra.mxu0 0.0
          %1106 = vmatprep.mubr.f32.mxu0 0.0
          %v1107 = vand.u32 %v411, 4294901760
          %v1108 = vsub.f32 %v411, %v1107
          %1109 = vmatmul.mubr.f32.gmra.mxu0 %v1108
          %v1110 = vpop.f32.mrf.mxu0
          %v1111 = vadd.f32 %v1034, %v1110
          %v1112 = vpop.f32.mrf.mxu0
          %v1113 = vadd.f32 %v1036, %v1112
          %1114 = vdwg.mxu0
          %1115 = vmatprep.subr.mxu0 0.0
          %1116 = vmatpush1.msra.mxu0 0.0
          %1117 = vmatprep.subr.mxu0 0.0
          %1118 = vmatpush1.msra.mxu0 0.0
          %1119 = vmatprep.subr.mxu0 0.0
          %1120 = vmatpush1.msra.mxu0 0.0
          %1121 = vmatprep.subr.mxu0 0.0
          %1122 = vmatpush1.msra.mxu0 0.0
          %1123 = vmatprep.subr.mxu0 0.0
          %1124 = vmatpush1.msra.mxu0 0.0
          %1125 = vmatprep.subr.mxu0 0.0
          %1126 = vmatpush1.msra.mxu0 0.0
          %1127 = vmatprep.subr.mxu0 0.0
          %1128 = vmatpush1.msra.mxu0 0.0
          %1129 = vmatprep.subr.mxu0 0.0
          %1130 = vmatpush1.msra.mxu0 0.0
          %1131 = vmatprep.subr.mxu0 0.0
          %1132 = vmatpush1.msra.mxu0 0.0
          %1133 = vmatprep.subr.mxu0 0.0
          %1134 = vmatpush1.msra.mxu0 0.0
          %1135 = vmatprep.subr.mxu0 0.0
          %1136 = vmatpush1.msra.mxu0 0.0
          %1137 = vmatprep.subr.mxu0 0.0
          %1138 = vmatpush1.msra.mxu0 0.0
          %1139 = vmatprep.subr.mxu0 0.0
          %1140 = vmatpush1.msra.mxu0 0.0
          %1141 = vmatprep.subr.mxu0 0.0
          %1142 = vmatpush1.msra.mxu0 0.0
          %1143 = vmatprep.subr.mxu0 0.0
          %1144 = vmatpush1.msra.mxu0 0.0
          %v1145 = vand.u32 %v391, 4294901760
          %1146 = vmatprep.subr.mxu0 %v1145
          %v1147 = vand.u32 %v390, 4294901760
          %1148 = vmatpush1.msra.mxu0 %v1147
          %1149 = vmatprep.subr.mxu0 0.0
          %1150 = vmatpush2.msra.mxu0 0.0
          %1151 = vmatprep.subr.mxu0 0.0
          %1152 = vmatpush2.msra.mxu0 0.0
          %1153 = vmatprep.subr.mxu0 0.0
          %1154 = vmatpush2.msra.mxu0 0.0
          %1155 = vmatprep.subr.mxu0 0.0
          %1156 = vmatpush2.msra.mxu0 0.0
          %1157 = vmatprep.subr.mxu0 0.0
          %1158 = vmatpush2.msra.mxu0 0.0
          %1159 = vmatprep.subr.mxu0 0.0
          %1160 = vmatpush2.msra.mxu0 0.0
          %1161 = vmatprep.subr.mxu0 0.0
          %1162 = vmatpush2.msra.mxu0 0.0
          %1163 = vmatprep.subr.mxu0 0.0
          %1164 = vmatpush2.msra.mxu0 0.0
          %1165 = vmatprep.subr.mxu0 0.0
          %1166 = vmatpush2.msra.mxu0 0.0
          %1167 = vmatprep.subr.mxu0 0.0
          %1168 = vmatpush2.msra.mxu0 0.0
          %1169 = vmatprep.subr.mxu0 0.0
          %1170 = vmatpush2.msra.mxu0 0.0
          %1171 = vmatprep.subr.mxu0 0.0
          %1172 = vmatpush2.msra.mxu0 0.0
          %1173 = vmatprep.subr.mxu0 0.0
          %1174 = vmatpush2.msra.mxu0 0.0
          %1175 = vmatprep.subr.mxu0 0.0
          %1176 = vmatpush2.msra.mxu0 0.0
          %1177 = vmatprep.subr.mxu0 0.0
          %1178 = vmatpush2.msra.mxu0 0.0
          %1179 = vmatprep.subr.mxu0 0.0
          %1180 = vmatpush2.msra.mxu0 0.0
          %1181 = vmatprep.mubr.f32.mxu0 0.0
          %v1182 = vand.u32 %v411, 4294901760
          %v1183 = vsub.f32 %v411, %v1182
          %v1184 = vand.u32 %v1183, 4294901760
          %1185 = vmatmul.mubr.f32.gmra.mxu0 %v1184
          %v1186 = vpop.f32.mrf.mxu0
          %v1187 = vadd.f32 %v1111, %v1186
          %v1188 = vpop.f32.mrf.mxu0
          %v1189 = vadd.f32 %v1113, %v1188
          %1190 = vdwg.mxu0
          %1191 = vmatprep.subr.mxu0 0.0
          %1192 = vmatpush1.msra.mxu0 0.0
          %1193 = vmatprep.subr.mxu0 0.0
          %1194 = vmatpush1.msra.mxu0 0.0
          %1195 = vmatprep.subr.mxu0 0.0
          %1196 = vmatpush1.msra.mxu0 0.0
          %1197 = vmatprep.subr.mxu0 0.0
          %1198 = vmatpush1.msra.mxu0 0.0
          %1199 = vmatprep.subr.mxu0 0.0
          %1200 = vmatpush1.msra.mxu0 0.0
          %1201 = vmatprep.subr.mxu0 0.0
          %1202 = vmatpush1.msra.mxu0 0.0
          %1203 = vmatprep.subr.mxu0 0.0
          %1204 = vmatpush1.msra.mxu0 0.0
          %1205 = vmatprep.subr.mxu0 0.0
          %1206 = vmatpush1.msra.mxu0 0.0
          %1207 = vmatprep.subr.mxu0 0.0
          %1208 = vmatpush1.msra.mxu0 0.0
          %1209 = vmatprep.subr.mxu0 0.0
          %1210 = vmatpush1.msra.mxu0 0.0
          %1211 = vmatprep.subr.mxu0 0.0
          %1212 = vmatpush1.msra.mxu0 0.0
          %1213 = vmatprep.subr.mxu0 0.0
          %1214 = vmatpush1.msra.mxu0 0.0
          %1215 = vmatprep.subr.mxu0 0.0
          %1216 = vmatpush1.msra.mxu0 0.0
          %1217 = vmatprep.subr.mxu0 0.0
          %1218 = vmatpush1.msra.mxu0 0.0
          %1219 = vmatprep.subr.mxu0 0.0
          %1220 = vmatpush1.msra.mxu0 0.0
          %v1221 = vand.u32 %v391, 4294901760
          %v1222 = vsub.f32 %v391, %v1221
          %v1223 = vand.u32 %v1222, 4294901760
          %1224 = vmatprep.subr.mxu0 %v1223
          %v1225 = vand.u32 %v390, 4294901760
          %v1226 = vsub.f32 %v390, %v1225
          %v1227 = vand.u32 %v1226, 4294901760
          %1228 = vmatpush1.msra.mxu0 %v1227
          %1229 = vmatprep.subr.mxu0 0.0
          %1230 = vmatpush2.msra.mxu0 0.0
          %1231 = vmatprep.subr.mxu0 0.0
          %1232 = vmatpush2.msra.mxu0 0.0
          %1233 = vmatprep.subr.mxu0 0.0
          %1234 = vmatpush2.msra.mxu0 0.0
          %1235 = vmatprep.subr.mxu0 0.0
          %1236 = vmatpush2.msra.mxu0 0.0
          %1237 = vmatprep.subr.mxu0 0.0
          %1238 = vmatpush2.msra.mxu0 0.0
          %1239 = vmatprep.subr.mxu0 0.0
          %1240 = vmatpush2.msra.mxu0 0.0
          %1241 = vmatprep.subr.mxu0 0.0
          %1242 = vmatpush2.msra.mxu0 0.0
          %1243 = vmatprep.subr.mxu0 0.0
          %1244 = vmatpush2.msra.mxu0 0.0
          %1245 = vmatprep.subr.mxu0 0.0
          %1246 = vmatpush2.msra.mxu0 0.0
          %1247 = vmatprep.subr.mxu0 0.0
          %1248 = vmatpush2.msra.mxu0 0.0
          %1249 = vmatprep.subr.mxu0 0.0
          %1250 = vmatpush2.msra.mxu0 0.0
          %1251 = vmatprep.subr.mxu0 0.0
          %1252 = vmatpush2.msra.mxu0 0.0
          %1253 = vmatprep.subr.mxu0 0.0
          %1254 = vmatpush2.msra.mxu0 0.0
          %1255 = vmatprep.subr.mxu0 0.0
          %1256 = vmatpush2.msra.mxu0 0.0
          %1257 = vmatprep.subr.mxu0 0.0
          %1258 = vmatpush2.msra.mxu0 0.0
          %1259 = vmatprep.subr.mxu0 0.0
          %1260 = vmatpush2.msra.mxu0 0.0
          %1261 = vmatprep.mubr.f32.mxu0 0.0
          %v1262 = vand.u32 %v411, 4294901760
          %1263 = vmatmul.mubr.f32.gmra.mxu0 %v1262
          %v1264 = vpop.f32.mrf.mxu0
          %v1265 = vadd.f32 %v1187, %v1264
          %v1266 = vpop.f32.mrf.mxu0
          %v1267 = vadd.f32 %v1189, %v1266
          %1268 = vdwg.mxu0
          %1269 = vmatprep.subr.mxu0 0.0
          %1270 = vmatpush1.msra.mxu0 0.0
          %1271 = vmatprep.subr.mxu0 0.0
          %1272 = vmatpush1.msra.mxu0 0.0
          %1273 = vmatprep.subr.mxu0 0.0
          %1274 = vmatpush1.msra.mxu0 0.0
          %1275 = vmatprep.subr.mxu0 0.0
          %1276 = vmatpush1.msra.mxu0 0.0
          %1277 = vmatprep.subr.mxu0 0.0
          %1278 = vmatpush1.msra.mxu0 0.0
          %1279 = vmatprep.subr.mxu0 0.0
          %1280 = vmatpush1.msra.mxu0 0.0
          %1281 = vmatprep.subr.mxu0 0.0
          %1282 = vmatpush1.msra.mxu0 0.0
          %1283 = vmatprep.subr.mxu0 0.0
          %1284 = vmatpush1.msra.mxu0 0.0
          %1285 = vmatprep.subr.mxu0 0.0
          %1286 = vmatpush1.msra.mxu0 0.0
          %1287 = vmatprep.subr.mxu0 0.0
          %1288 = vmatpush1.msra.mxu0 0.0
          %1289 = vmatprep.subr.mxu0 0.0
          %1290 = vmatpush1.msra.mxu0 0.0
          %1291 = vmatprep.subr.mxu0 0.0
          %1292 = vmatpush1.msra.mxu0 0.0
          %1293 = vmatprep.subr.mxu0 0.0
          %1294 = vmatpush1.msra.mxu0 0.0
          %1295 = vmatprep.subr.mxu0 0.0
          %1296 = vmatpush1.msra.mxu0 0.0
          %1297 = vmatprep.subr.mxu0 0.0
          %1298 = vmatpush1.msra.mxu0 0.0
          %v1299 = vand.u32 %v391, 4294901760
          %1300 = vmatprep.subr.mxu0 %v1299
          %v1301 = vand.u32 %v390, 4294901760
          %1302 = vmatpush1.msra.mxu0 %v1301
          %1303 = vmatprep.subr.mxu0 0.0
          %1304 = vmatpush2.msra.mxu0 0.0
          %1305 = vmatprep.subr.mxu0 0.0
          %1306 = vmatpush2.msra.mxu0 0.0
          %1307 = vmatprep.subr.mxu0 0.0
          %1308 = vmatpush2.msra.mxu0 0.0
          %1309 = vmatprep.subr.mxu0 0.0
          %1310 = vmatpush2.msra.mxu0 0.0
          %1311 = vmatprep.subr.mxu0 0.0
          %1312 = vmatpush2.msra.mxu0 0.0
          %1313 = vmatprep.subr.mxu0 0.0
          %1314 = vmatpush2.msra.mxu0 0.0
          %1315 = vmatprep.subr.mxu0 0.0
          %1316 = vmatpush2.msra.mxu0 0.0
          %1317 = vmatprep.subr.mxu0 0.0
          %1318 = vmatpush2.msra.mxu0 0.0
          %1319 = vmatprep.subr.mxu0 0.0
          %1320 = vmatpush2.msra.mxu0 0.0
          %1321 = vmatprep.subr.mxu0 0.0
          %1322 = vmatpush2.msra.mxu0 0.0
          %1323 = vmatprep.subr.mxu0 0.0
          %1324 = vmatpush2.msra.mxu0 0.0
          %1325 = vmatprep.subr.mxu0 0.0
          %1326 = vmatpush2.msra.mxu0 0.0
          %1327 = vmatprep.subr.mxu0 0.0
          %1328 = vmatpush2.msra.mxu0 0.0
          %1329 = vmatprep.subr.mxu0 0.0
          %1330 = vmatpush2.msra.mxu0 0.0
          %1331 = vmatprep.subr.mxu0 0.0
          %1332 = vmatpush2.msra.mxu0 0.0
          %1333 = vmatprep.subr.mxu0 0.0
          %1334 = vmatpush2.msra.mxu0 0.0
          %1335 = vmatprep.mubr.f32.mxu0 0.0
          %v1336 = vand.u32 %v411, 4294901760
          %1337 = vmatmul.mubr.f32.gmra.mxu0 %v1336
          %v1338 = vpop.f32.mrf.mxu0
          %v1339 = vadd.f32 %v1265, %v1338
          %v1340 = vpop.f32.mrf.mxu0
          %v1341 = vadd.f32 %v1267, %v1340
          %1342 = vdwg.mxu0
          %v1347 = vcombine.low %v874, %v876
          %v1348 = vcombine.low %v1339, %v1341
          %v1350 = vunpack.c.l.s4 1966171168
          %v1351 = vunpack.c.0.s8 %v1350
          %v1352 = vlaneseq
          %v1353 = vshrl.u32 %v1352, 7
          %v1354 = vsub.s32 %v1351, %v1353
          %v1355 = vrot.slane %v1347, %v1354
          %v1357 = vunpack.c.l.s4 1966171168
          %v1358 = vunpack.c.0.s8 %v1357
          %v1359 = vlaneseq
          %v1360 = vshrl.u32 %v1359, 7
          %v1361 = vsub.s32 %v1358, %v1360
          %v1362 = vrot.slane %v1348, %v1361
          %v1363 = vcombine.low %v1355, %v1362
          %v1365 = vunpack.c.l.s4 1966171168
          %v1366 = vunpack.c.0.s8 %v1365
          %v1367 = vlaneseq
          %v1368 = vshrl.u32 %v1367, 7
          %v1369 = vsub.s32 %v1366, %v1368
          %v1370 = vrot.slane %v1363, %v1369
          %v1372 = vadd.f32 %v408, %v1370
          %v1373 = vlaneseq
          %vm1374 = vcmp.ge.s32.totalorder %v1373, 0
          %vm1375 = vcmp.lt.s32.totalorder %v1373, 512
          %vm1376 = vmand %vm1374, %vm1375
          %1377 = vst.msk [vmem:[#allocation7] sm:$0xf] %vm1376, %v1372
          %v1378 = vld [vmem:[#allocation2] sm:$0x1]
          %vm1379 = vcmask 57344
          %v1380 = vsel %vm1379, %v407, 0.0
          %1381 = vadd.xlane.f32.xlu0 %v1380
          %v1382 = vpop.xlane.xlu0 %1381
          %v1383 = vadd.f32 %v1378, %v1382
          %vm1384 = vcmask 0
          %1385 = vst.msk [vmem:[#allocation2] sm:$0x1] %vm1384, %v1383
        $region44: #{tpu_custom_call.1} parent=35 // pred_fallthru
          _
        %p1386 = scmp.eq.s32.totalorder %s26, 1
        // Predicated region
        $region49: #{tpu_custom_call.1} parent=35 // pred_check
          %p1387 = pneg %p1386
        $region50: #{tpu_custom_call.1} parent=35 // pred_check_branch
          %1389 = sbr.rel (%p1387) target = $region52
        $region51: #{tpu_custom_call.1} parent=35 // pred_region
          %p1390 = scmp.eq.s32.totalorder %s27, 0
          // Predicated region
          $region53: #{tpu_custom_call.1} parent=51 // pred_check
            %p1391 = pneg %p1390
          $region54: #{tpu_custom_call.1} parent=51 // pred_check_branch
            %1393 = sbr.rel (%p1391) target = $region56
          $region55: #{tpu_custom_call.1} parent=51 // pred_region
            %v1394 = vld [vmem:[#allocation2] sm:$0x1]
            %v1395 = vmax.f32 %v1394, 1.0
            %v1396 = vrcp.pop %v1395
            %v1397 = vmul.f32 1.0, %v1396
            %v1398 = vld [vmem:[#allocation7] sm:$0xf]
            %1400 = vset.pattern.permute.xlu0 0
            %1401 = vperm.xlu0 %1400, %v1397
            %v1402 = vpop.permute.xlu0 %1401
            %v1404 = vlaneseq
            %v1405 = vshrl.u32 %v1404, 7
            %v1406 = vsub.s32 0, %v1405
            %v1407 = vrot.slane %v1402, %v1406
            %v1408 = vmul.f32 %v1398, %v1407
            %v1409 = vlaneseq
            %vm1410 = vcmp.ge.s32.totalorder %v1409, 0
            %vm1411 = vcmp.lt.s32.totalorder %v1409, 512
            %vm1412 = vmand %vm1410, %vm1411
            %1413 = vst.msk [vmem:[#allocation7] sm:$0xf] %vm1412, %v1408
            %vm1414 = vcmask 0
            %1415 = vst.msk [vmem:[#allocation6] sm:$0x1] %vm1414, 0.0
          $region56: #{tpu_custom_call.1} parent=51 // pred_fallthru
            _
          %v1416 = vld [vmem:[#allocation7] sm:$0xf]
          %v1417 = vld [vmem:[%s371] sm:$0xff]
          %v1418 = vld [vmem:[%s383] sm:$0xff]
          %v1419 = vmul.f32 %v388, %v388
          %v1420 = vmul.f32 %v389, %v389
          %v1421 = vmul.f32 %v390, %v390
          %v1422 = vmul.f32 %v391, %v391
          %v1423 = vadd.f32 %v1419, %v1420
          %v1424 = vadd.f32 %v1423, %v1421
          %v1425 = vadd.f32 %v1424, %v1422
          %1426 = vadd.xlane.f32.xlu0 %v1425
          %v1427 = vpop.xlane.xlu0 %1426
          %v1429 = vlaneseq
          %v1430 = vshrl.u32 %v1429, 7
          %v1431 = vsub.s32 0, %v1430
          %v1432 = vrot.slane %v1416, %v1431
          %v1433 = vlaneseq
          %v1434 = vshrl.u32 %v1433, 7
          %v1435 = vsub.s32 1, %v1434
          %v1436 = vrot.slane %v1416, %v1435
          %v1437 = vlaneseq
          %v1438 = vshrl.u32 %v1437, 7
          %v1439 = vsub.s32 2, %v1438
          %v1440 = vrot.slane %v1416, %v1439
          %v1441 = vlaneseq
          %v1442 = vshrl.u32 %v1441, 7
          %v1443 = vsub.s32 3, %v1442
          %v1444 = vrot.slane %v1416, %v1443
          %v1449 = vmul.f32 %v388, %v1432
          %v1450 = vmul.f32 %v389, %v1436
          %v1451 = vmul.f32 %v390, %v1440
          %v1452 = vmul.f32 %v391, %v1444
          %v1453 = vadd.f32 %v1449, %v1450
          %v1454 = vadd.f32 %v1453, %v1451
          %v1455 = vadd.f32 %v1454, %v1452
          %1456 = vadd.xlane.f32.xlu0 %v1455
          %v1457 = vpop.xlane.xlu0 %1456
          %v1458 = vmul.f32 %v1416, %v1416
          %v1460 = vlaneseq
          %v1461 = vshrl.u32 %v1460, 7
          %v1462 = vsub.s32 0, %v1461
          %v1463 = vrot.slane %v1458, %v1462
          %v1464 = vlaneseq
          %v1465 = vshrl.u32 %v1464, 7
          %v1466 = vsub.s32 1, %v1465
          %v1467 = vrot.slane %v1458, %v1466
          %v1468 = vlaneseq
          %v1469 = vshrl.u32 %v1468, 7
          %v1470 = vsub.s32 2, %v1469
          %v1471 = vrot.slane %v1458, %v1470
          %v1472 = vlaneseq
          %v1473 = vshrl.u32 %v1472, 7
          %v1474 = vsub.s32 3, %v1473
          %v1475 = vrot.slane %v1458, %v1474
          %vm1480 = vcmask 1040384
          %v1481 = vsel %vm1480, %v1463, 0.0
          %v1482 = vsel %vm1480, %v1467, 0.0
          %v1483 = vadd.f32 %v1481, %v1482
          %v1484 = vsel %vm1480, %v1471, 0.0
          %v1485 = vadd.f32 %v1483, %v1484
          %v1486 = vsel %vm1480, %v1475, 0.0
          %v1487 = vadd.f32 %v1485, %v1486
          %1488 = vadd.xlane.f32.xlu0 %v1487
          %v1489 = vpop.xlane.xlu0 %1488
          %v1490 = vmul.f32 %v1457, 2.0
          %v1491 = vsub.f32 %v1427, %v1490
          %v1492 = vlaneseq
          %v1493 = vshrl.u32 %v1492, 7
          %v1494 = vsub.s32 0, %v1493
          %v1495 = vrot.slane %v1489, %v1494
          %v1496 = vadd.f32 %v1491, %v1495
          %v1497 = vmax.f32 %v1496, 0.0
          %v1498 = vrsqrt.pop %v1497
          %v1499 = vmul.f32 %v1497, %v1498
          %vm1500 = vcmp.eq.f32.partialorder %v1497, inf
          %v1501 = vsel %vm1500, %v1497, %v1499
          %vm1502 = vcmp.eq.f32.partialorder %v1497, 0.0
          %v1503 = vand.u32 %v1497, 2147483648
          %v1504 = vsel %vm1502, %v1503, %v1501
          %v1505 = vmul.f32 %v1497, 0.5
          %v1506 = vmul.f32 %v1417, %v1505
          %v1507 = vsub.f32 3.0, %v1504
          %v1508 = vmax.f32 %v1507, 0.0
          %v1509 = vmul.f32 %v1508, %v1508
          %v1510 = vmul.f32 %v1418, %v1509
          %v1511 = vadd.f32 %v1506, %v1510
          %v1512 = vld [vmem:[#allocation6] sm:$0x1]
          %vm1513 = vcmask 7168
          %v1514 = vsel %vm1513, %v1511, 0.0
          %1515 = vadd.xlane.f32.xlu0 %v1514
          %v1516 = vpop.xlane.xlu0 %1515
          %v1517 = vrot.slane %v1516, 4
          %v1518 = vadd.f32 %v1516, %v1517
          %v1519 = vrot.slane %v1518, 2
          %v1520 = vadd.f32 %v1518, %v1519
          %v1521 = vrot.slane %v1520, 1
          %v1522 = vadd.f32 %v1520, %v1521
          %s1523 = vtos %v1522
          %v1524 = vstv %s1523
          %v1525 = vadd.f32 %v1512, %v1524
          %vm1526 = vcmask 0
          %1527 = vst.msk [vmem:[#allocation6] sm:$0x1] %vm1526, %v1525
          // Predicated region
          $region57: #{tpu_custom_call.1} parent=51 // pred_check
            %p1528 = pneg %p1390
          $region58: #{tpu_custom_call.1} parent=51 // pred_check_branch
            %1530 = sbr.rel (%p1528) target = $region60
          $region59: #{tpu_custom_call.1} parent=51 // pred_region
            %v1531 = vld [vmem:[#allocation6] sm:$0x1]
            %v1532 = vmul.f32 %v1531, 0.125
            %1533 = vst.msk [vmem:[#allocation6] sm:$0x1] %vm1526, %v1532
          $region60: #{tpu_custom_call.1} parent=51 // pred_fallthru
            _
        $region52: #{tpu_custom_call.1} parent=35 // pred_fallthru
          _
        // Predicated region
        $region61: #{tpu_custom_call.1} parent=35 // pred_check
          %p1534 = pneg %p183
        $region62: #{tpu_custom_call.1} parent=35 // pred_check_branch
          %1536 = sbr.rel (%p1534) target = $region64
        $region63: #{tpu_custom_call.1} parent=35 // pred_region
          %s1538 = ssub.s32 16, 16
          %1539 = vsyncadd [#allocation5], %s1538
          %s1541 = sshll.u32 [#allocation6], 4
          %s1542 = int_to_ptr.vmem [resolvable:$true] %s1541
          %1544 = dma.vmem_to_hbm [thread:$0]  %s1542, 16, %s4, [#allocation5]
        $region64: #{tpu_custom_call.1} parent=35 // pred_fallthru
          _
        // Predicated region
        $region65: #{tpu_custom_call.1} parent=35 // pred_check
          %p1545 = pneg %p204
        $region66: #{tpu_custom_call.1} parent=35 // pred_check_branch
          %1547 = sbr.rel (%p1545) target = $region68
        $region67: #{tpu_custom_call.1} parent=35 // pred_region
          %s1549 = ssub.s32 64, 64
          %1550 = vsyncadd [#allocation8], %s1549
          %s1552 = sshll.u32 [#allocation7], 4
          %s1553 = int_to_ptr.vmem [resolvable:$true] %s1552
          %1555 = dma.vmem_to_hbm [thread:$0]  %s1553, 64, %s5, [#allocation8]
        $region68: #{tpu_custom_call.1} parent=35 // pred_fallthru
          _
        // Predicated region
        $region69: #{tpu_custom_call.1} parent=35 // pred_check
          %p1556 = pneg %p183
        $region70: #{tpu_custom_call.1} parent=35 // pred_check_branch
          %1558 = sbr.rel (%p1556) target = $region72
        $region71: #{tpu_custom_call.1} parent=35 // pred_region
          %1559 = dma.done [#allocation5], 16
        $region72: #{tpu_custom_call.1} parent=35 // pred_fallthru
          _
        // Predicated region
        $region73: #{tpu_custom_call.1} parent=35 // pred_check
          %p1560 = pneg %p204
        $region74: #{tpu_custom_call.1} parent=35 // pred_check_branch
          %1562 = sbr.rel (%p1560) target = $region76
        $region75: #{tpu_custom_call.1} parent=35 // pred_region
          %1563 = dma.done [#allocation8], 64
        $region76: #{tpu_custom_call.1} parent=35 // pred_fallthru
          _
      $region36: #{tpu_custom_call.1} parent=5 // pred_fallthru
        _
      %p1564 = scmp.le.s32.totalorder 2, %s17
      // Predicated region
      $region77: #{tpu_custom_call.1} parent=5 // pred_check
        %p1565 = pneg %p1564
      $region78: #{tpu_custom_call.1} parent=5 // pred_check_branch
        %1567 = sbr.rel (%p1565) target = $region80
      $region79: #{tpu_custom_call.1} parent=5 // pred_region
        %s1568 = ssub.s32 %s17, 2
      $region80: #{tpu_custom_call.1} parent=5 // pred_fallthru
        _
    $region6: #{tpu_custom_call.1} parent=1 // loop_footer
      %s21 = sadd.s32 1, %s17
    $region7: #{tpu_custom_call.1} parent=1 // loop_footer_branch
      %16 = sbr.rel target = $region3
    $region8: #{tpu_custom_call.1} parent=1 // loop_exit
      _
    %1569 = vsyncpa [#allocation4], 1
    %s1570 = scalar_lea.sflag [#allocation4], 1
    %1571 = vsyncpa %s1570, 1
    %1572 = vsyncpa [#allocation5], 1
    %s1573 = scalar_lea.sflag [#allocation5], 1
    %1574 = vsyncpa %s1573, 1
    %1575 = vsyncpa [#allocation8], 1

</llo_original>
